<compile_context>
chip_gen: v5e
topology: v5e:2x2
jax: 0.10.0
libtpu: 0.0.40
codegen_flags: <defaults>
</compile_context>

<pallas_src>
import jax
import jax.numpy as jnp
from jax import lax
from jax.experimental import pallas as pl
from jax.experimental.pallas import tpu as pltpu


def tlstm_kernel(x_ref, tanht_ref, m_ref, cm_ref,
                 wx5_ref, bias5_ref, whc_ref, wp_ref, bp_ref,
                 all_ref, cur_ref,
                 gx_ref, hs_ref):
    """One batch block: full recurrence over all timesteps in a single call.

    x_ref     : (n_t, BB, D)   time-major inputs
    tanht_ref : (n_t, BB, 1)   tanh(T), NOT broadcast over H
    m_ref     : (n_t, BB, 1)   M mask
    cm_ref    : (n_t, BB, 1)   cur_M mask
    wx5_ref   : (D, 5H)        [W_x2h | 0]        (packed columns f|i|o|c_hat|c_s)
    bias5_ref : (1, 5H)        [b_x2h+b_h2h | b_c2h]
    whc_ref   : (2H, 5H)       block-diag(W_h2h, W_c2h): [h|c] @ whc = [h@Wh2h | c@Wc2h]
    wp_ref    : (H, L), bp_ref : (1, L)   prediction head
    all_ref   : (n_t, BB, L)   output: per-step predictions (time-major)
    cur_ref   : (BB, L)        output: cur_M-weighted sum
    gx_ref    : (n_t, BB, 5H)  VMEM scratch: hoisted x2h projections
    hs_ref    : (n_t, BB, H)   VMEM scratch: hidden states
    """
    n_t, BB, _ = x_ref.shape
    H = hs_ref.shape[-1]
    G = gx_ref.shape[-1]          # 5H
    L = cur_ref.shape[-1]
    f32 = jnp.float32

    # ---- Phase 1 (hoisted): every timestep's x2h (+ biases) in ONE matmul.
    x_flat = x_ref[...].reshape(n_t * BB, x_ref.shape[-1])
    gx = jnp.dot(x_flat, wx5_ref[...], preferred_element_type=f32) + bias5_ref[...]
    gx_ref[...] = gx.reshape(n_t, BB, G)

    # ---- Phase 2: serial recurrence, one fused MXU push per step.
    whc = whc_ref[...]

    def step(t, carry):
        h, c = carry
        hc = jnp.concatenate([h, c], axis=-1)                              # (BB, 2H)
        g = gx_ref[t] + jnp.dot(hc, whc, preferred_element_type=f32)       # (BB, 5H)
        sig = jax.nn.sigmoid(g[:, :3 * H])                                 # f|i|o packed
        tnh = jnp.tanh(g[:, 3 * H:])                                       # c_hat|c_s packed
        f_t, i_t, o_t = sig[:, :H], sig[:, H:2 * H], sig[:, 2 * H:]
        c_hat, c_s = tnh[:, :H], tnh[:, H:]
        c_star = (c - c_s) + c_s * tanht_ref[t]                            # lane broadcast
        c_new = f_t * c_star + i_t * c_hat
        h_new = o_t * jnp.tanh(c_new)
        hs_ref[t] = h_new
        return h_new, c_new

    h0 = jnp.zeros((BB, H), f32)
    c0 = jnp.zeros((BB, H), f32)
    if n_t <= 16:
        # Short, static sequence: full unroll gives the scheduler visibility.
        carry = (h0, c0)
        for t in range(n_t):
            carry = step(t, carry)
    else:
        # Long sequence: rolled loop (hidden states live in hs_ref, not vregs).
        lax.fori_loop(0, n_t, step, (h0, c0))

    # ---- Phase 3 (hoisted): one prediction matmul, one block store, one sum.
    hs_flat = hs_ref[...].reshape(n_t * BB, H)
    pred = jnp.dot(hs_flat, wp_ref[...], preferred_element_type=f32) + bp_ref[...]
    all_tm = pred.reshape(n_t, BB, L) * m_ref[...]
    all_ref[...] = all_tm
    cur_ref[...] = jnp.sum(all_tm * cm_ref[...], axis=0)


def _num_tensorcores():
    """v7x has 2 TensorCores per chip sharing the grid; v5e/v6e have 1."""
    try:
        kind = jax.devices()[0].device_kind.lower()
    except Exception:
        return 1
    return 2 if "v7" in kind else 1


def _pick_batch_block(B, batch_block, n_tc):
    """Largest BB that divides B, is a sublane-tile multiple of 8 (or == B),
    stays <= batch_block, and leaves >= n_tc grid blocks so both v7x
    TensorCores get work when the batch allows it."""
    divisors = [bb for bb in range(1, B + 1)
                if B % bb == 0 and (bb % 8 == 0 or bb == B)]
    preferred = [bb for bb in divisors if bb <= batch_block and B // bb >= n_tc]
    if preferred:
        return max(preferred)
    capped = [bb for bb in divisors if bb <= batch_block]
    if capped:
        return max(capped)
    return min(divisors)


def call_predictor_forward(X, M, cur_M, T, params, batch_block=8):
    """X: (B, T, D); M, cur_M, T: (B, T).  Returns (all_output (B,T,L), cur_output (B,L))."""
    B, n_t, D = X.shape
    H = params["w_h2h"].shape[0]
    L = params["w_pred"].shape[1]
    f32 = jnp.float32

    n_tc = _num_tensorcores()
    BB = _pick_batch_block(B, batch_block, n_tc)
    nb = B // BB

    # ---- host-side layout plumbing (time-major so per-step recurrence reads
    # are contiguous) and packed-weight preprocessing ----
    Xt = jnp.transpose(X, (1, 0, 2)).astype(f32)                    # (T, B, D)
    tanhT = jnp.tanh(T.astype(f32)).T[:, :, None]                   # (T, B, 1)  un-broadcast
    Mt = M.astype(f32).T[:, :, None]                                # (T, B, 1)
    cMt = cur_M.astype(f32).T[:, :, None]                           # (T, B, 1)

    wx2h = params["w_x2h"].astype(f32)                              # (D, 4H)
    wh2h = params["w_h2h"].astype(f32)                              # (H, 4H)
    wc2h = params["w_c2h"].astype(f32)                              # (H, H)
    # packed x-side weights / biases: columns = [f | i | o | c_hat | c_s]
    wx5 = jnp.concatenate([wx2h, jnp.zeros((D, H), f32)], axis=1)   # (D, 5H)
    bias5 = jnp.concatenate(
        [(params["b_x2h"] + params["b_h2h"]).astype(f32),
         params["b_c2h"].astype(f32)], axis=1)                      # (1, 5H)
    # block-diagonal recurrent weights: [h | c] @ whc = [h@Wh2h | c@Wc2h]
    whc = jnp.concatenate(
        [jnp.concatenate([wh2h, jnp.zeros((H, H), f32)], axis=1),
         jnp.concatenate([jnp.zeros((H, 4 * H), f32), wc2h], axis=1)],
        axis=0)                                                     # (2H, 5H)
    wp = params["w_pred"].astype(f32)
    bp = params["b_pred"].astype(f32)
    # For production-sized H: cast wx5/whc/wp to bfloat16 here (MXU inputs,
    # f32 accumulation via preferred_element_type) -- halves weight traffic.

    def batch_spec(shape):
        blk = (shape[0], BB) + tuple(shape[2:])
        trail = (0,) * (len(shape) - 2)
        return pl.BlockSpec(blk, lambda b, _t=trail: (0, b) + _t)

    def full_spec(arr):
        nd = arr.ndim
        return pl.BlockSpec(arr.shape, lambda b, _n=nd: (0,) * _n)

    in_specs = [
        batch_spec(Xt.shape), batch_spec(tanhT.shape),
        batch_spec(Mt.shape), batch_spec(cMt.shape),
        full_spec(wx5), full_spec(bias5), full_spec(whc),
        full_spec(wp), full_spec(bp),
    ]
    out_specs = (
        pl.BlockSpec((n_t, BB, L), lambda b: (0, b, 0)),   # all_output (time-major)
        pl.BlockSpec((BB, L), lambda b: (b, 0)),           # cur_output
    )
    out_shapes = (
        jax.ShapeDtypeStruct((n_t, B, L), f32),
        jax.ShapeDtypeStruct((B, L), f32),
    )

    all_tm, cur_out = pl.pallas_call(
        tlstm_kernel,
        out_shape=out_shapes,
        grid_spec=pltpu.PrefetchScalarGridSpec(
            num_scalar_prefetch=0,
            grid=(nb,),                                    # independent batch blocks
            in_specs=in_specs,
            out_specs=out_specs,
            scratch_shapes=[pltpu.VMEM((n_t, BB, 5 * H), f32),   # packed x2h projections
                            pltpu.VMEM((n_t, BB, H), f32)],      # hidden states
        ),
        compiler_params=pltpu.CompilerParams(
            dimension_semantics=("parallel",)),            # batch axis is truly parallel
    )(Xt, tanhT, Mt, cMt, wx5, bias5, whc, wp, bp)

    # Tiny (B*T*L) host transpose back to batch-major; the kernel keeps the
    # time-major layout so the serial recurrence reads contiguous per-step tiles.
    all_output = jnp.transpose(all_tm, (1, 0, 2))          # (B, T, L)
    return all_output, cur_out


def init_params(key, input_size, hidden_size, label_size):
    """Deterministic synthetic parameters, uniform(-std, std), std = 1/sqrt(hidden)."""
    std = 1.0 / (hidden_size ** 0.5)
    ks = jax.random.split(key, 8)
    u = lambda k, shape: jax.random.uniform(k, shape, jnp.float32, -std, std)
    return {
        "w_x2h": u(ks[0], (input_size, 4 * hidden_size)),
        "b_x2h": u(ks[1], (1, 4 * hidden_size)),
        "w_h2h": u(ks[2], (hidden_size, 4 * hidden_size)),
        "b_h2h": u(ks[3], (1, 4 * hidden_size)),
        "w_c2h": u(ks[4], (hidden_size, hidden_size)),
        "b_c2h": u(ks[5], (1, hidden_size)),
        "w_pred": u(ks[6], (hidden_size, label_size)),
        "b_pred": u(ks[7], (1, label_size)),
    }


def reference_forward(X, M, cur_M, T, params):
    """Pure-JAX reference replicating the PyTorch forward exactly."""
    B, n_t, _ = X.shape
    H = params["w_h2h"].shape[0]
    h = jnp.zeros((B, H), jnp.float32)
    c = jnp.zeros((B, H), jnp.float32)
    outs = []
    for t in range(n_t):
        x = X[:, t, :]
        tt = T[:, t].reshape(-1, 1)
        gate = (x @ params["w_x2h"] + params["b_x2h"]
                + h @ params["w_h2h"] + params["b_h2h"])
        f, i, o, chat = jnp.split(gate, 4, axis=-1)
        f, i, o = jax.nn.sigmoid(f), jax.nn.sigmoid(i), jax.nn.sigmoid(o)
        chat = jnp.tanh(chat)
        c_s = jnp.tanh(c @ params["w_c2h"] + params["b_c2h"])
        c_star = (c - c_s) + c_s * jnp.tanh(tt)
        c = f * c_star + i * chat
        h = o * jnp.tanh(c)
        outs.append(h)
    outs = jnp.stack(outs, axis=1)                            # (B, T, H)
    all_output = (outs @ params["w_pred"] + params["b_pred"]) * M[..., None]
    cur_output = (all_output * cur_M[..., None]).sum(axis=1)
    return all_output, cur_output


if __name__ == "__main__":
    key = jax.random.PRNGKey(0)
    B, n_timestep, input_size = 8, 8, 16
    hidden_size = 32          # output_size == hidden_size (required by the module)
    label_size = 1

    k_x, k_t, k_m, k_p = jax.random.split(key, 4)
    X = jax.random.normal(k_x, (B, n_timestep, input_size), jnp.float32)
    T = jax.random.uniform(k_t, (B, n_timestep), jnp.float32, 0.0, 2.0)
    M = (jax.random.uniform(k_m, (B, n_timestep)) > 0.3).astype(jnp.float32)
    cur_M = jnp.zeros((B, n_timestep), jnp.float32).at[:, -1].set(1.0)

    params = init_params(k_p, input_size, hidden_size, label_size)

    all_out, cur_out = call_predictor_forward(X, M, cur_M, T, params)
    jax.block_until_ready((all_out, cur_out))

    ref_all, ref_cur = reference_forward(X, M, cur_M, T, params)
    assert jnp.allclose(all_out, ref_all, atol=1e-4, rtol=1e-4)
    assert jnp.allclose(cur_out, ref_cur, atol=1e-4, rtol=1e-4)

    print("KERNEL_OK")
</pallas_src>

<mosaic_0001>
module attributes {stable_mosaic.version = 11 : i64} {
  func.func @tlstm_kernel(%arg0: i32, %arg1: memref<8x8x16xf32, #tpu.memory_space<vmem>>, %arg2: memref<8x8x1xf32, #tpu.memory_space<vmem>>, %arg3: memref<8x8x1xf32, #tpu.memory_space<vmem>>, %arg4: memref<8x8x1xf32, #tpu.memory_space<vmem>>, %arg5: memref<16x160xf32, #tpu.memory_space<vmem>>, %arg6: memref<1x160xf32, #tpu.memory_space<vmem>>, %arg7: memref<64x160xf32, #tpu.memory_space<vmem>>, %arg8: memref<32x1xf32, #tpu.memory_space<vmem>>, %arg9: memref<1x1xf32, #tpu.memory_space<vmem>>, %arg10: memref<8x8x1xf32, #tpu.memory_space<vmem>>, %arg11: memref<8x1xf32, #tpu.memory_space<vmem>>, %arg12: memref<8x8x160xf32, #tpu.memory_space<vmem>>, %arg13: memref<8x8x32xf32, #tpu.memory_space<vmem>>) attributes {dimension_semantics = [#tpu.dimension_semantics<parallel>], iteration_bounds = array<i64: 1>, scalar_prefetch = 0 : i64, scratch_operands = 2 : i64, tpu.core_type = #tpu.core_type<tc>, window_params = [{transform_indices = @transform_0, window_bounds = array<i64: 8, 8, 16>}, {transform_indices = @transform_1, window_bounds = array<i64: 8, 8, 1>}, {transform_indices = @transform_2, window_bounds = array<i64: 8, 8, 1>}, {transform_indices = @transform_3, window_bounds = array<i64: 8, 8, 1>}, {pipeline_mode = #tpu.pipeline_mode<synchronous>, transform_indices = @transform_4, window_bounds = array<i64: 16, 160>}, {pipeline_mode = #tpu.pipeline_mode<synchronous>, transform_indices = @transform_5, window_bounds = array<i64: 1, 160>}, {pipeline_mode = #tpu.pipeline_mode<synchronous>, transform_indices = @transform_6, window_bounds = array<i64: 64, 160>}, {pipeline_mode = #tpu.pipeline_mode<synchronous>, transform_indices = @transform_7, window_bounds = array<i64: 32, 1>}, {pipeline_mode = #tpu.pipeline_mode<synchronous>, transform_indices = @transform_8, window_bounds = array<i64: 1, 1>}, {transform_indices = @transform_9, window_bounds = array<i64: 8, 8, 1>}, {transform_indices = @transform_10, window_bounds = array<i64: 8, 1>}]} {
    %c0 = arith.constant 0 : index
    %c0_0 = arith.constant 0 : index
    %c0_1 = arith.constant 0 : index
    %0 = vector.load %arg1[%c0, %c0_0, %c0_1] : memref<8x8x16xf32, #tpu.memory_space<vmem>>, vector<8x8x16xf32>
    %1 = vector.shape_cast %0 : vector<8x8x16xf32> to vector<64x16xf32>
    %c0_2 = arith.constant 0 : index
    %c0_3 = arith.constant 0 : index
    %2 = vector.load %arg5[%c0_2, %c0_3] : memref<16x160xf32, #tpu.memory_space<vmem>>, vector<16x160xf32>
    %cst = arith.constant dense<0.000000e+00> : vector<64x160xf32>
    %3 = tpu.matmul %1, %2, %cst {dimension_numbers = #tpu.dot_dimension_numbers<[1], [0], [0], [1], [0, 0, 1, 1], [], []>} : vector<64x16xf32>, vector<16x160xf32>, vector<64x160xf32> -> vector<64x160xf32>
    %c0_4 = arith.constant 0 : index
    %c0_5 = arith.constant 0 : index
    %4 = vector.load %arg6[%c0_4, %c0_5] : memref<1x160xf32, #tpu.memory_space<vmem>>, vector<1x160xf32>
    %5 = vector.broadcast %4 : vector<1x160xf32> to vector<64x160xf32>
    %6 = arith.addf %3, %5 : vector<64x160xf32>
    %7 = vector.shape_cast %6 : vector<64x160xf32> to vector<8x8x160xf32>
    %c0_6 = arith.constant 0 : index
    %c0_7 = arith.constant 0 : index
    %c0_8 = arith.constant 0 : index
    %8 = vector.load %arg12[%c0_6, %c0_7, %c0_8] : memref<8x8x160xf32, #tpu.memory_space<vmem>>, vector<8x8x160xf32>
    tpu.vector_store %arg12[%c0_6, %c0_7, %c0_8], %7 {strides = array<i32>} : memref<8x8x160xf32, #tpu.memory_space<vmem>>, vector<8x8x160xf32>,
    %c0_9 = arith.constant 0 : index
    %c0_10 = arith.constant 0 : index
    %9 = vector.load %arg7[%c0_9, %c0_10] : memref<64x160xf32, #tpu.memory_space<vmem>>, vector<64x160xf32>
    %cst_11 = arith.constant 0.000000e+00 : f32
    %10 = vector.broadcast %cst_11 : f32 to vector<8x32xf32>
    %cst_12 = arith.constant 0.000000e+00 : f32
    %11 = vector.broadcast %cst_12 : f32 to vector<8x32xf32>
    %12 = tpu.concatenate %10, %11 in 1 : vector<8x32xf32>, vector<8x32xf32> -> vector<8x64xf32>
    %c0_13 = arith.constant 0 : index
    %c0_14 = arith.constant 0 : index
    %c0_15 = arith.constant 0 : index
    %13 = vector.load %arg12[%c0_13, %c0_14, %c0_15] : memref<8x8x160xf32, #tpu.memory_space<vmem>>, vector<1x8x160xf32>
    %14 = vector.shape_cast %13 : vector<1x8x160xf32> to vector<8x160xf32>
    %cst_16 = arith.constant dense<0.000000e+00> : vector<8x160xf32>
    %15 = tpu.matmul %12, %9, %cst_16 {dimension_numbers = #tpu.dot_dimension_numbers<[1], [0], [0], [1], [0, 0, 1, 1], [], []>} : vector<8x64xf32>, vector<64x160xf32>, vector<8x160xf32> -> vector<8x160xf32>
    %16 = arith.addf %14, %15 : vector<8x160xf32>
    %17 = vector.extract_strided_slice %16 {offsets = [0, 0], sizes = [8, 96], strides = [1, 1]} : vector<8x160xf32> to vector<8x96xf32>
    %18 = arith.negf %17 : vector<8x96xf32>
    %19 = math.exp %18 : vector<8x96xf32>
    %cst_17 = arith.constant 1.000000e+00 : f32
    %20 = vector.broadcast %cst_17 : f32 to vector<8x96xf32>
    %21 = arith.addf %20, %19 : vector<8x96xf32>
    %22 = arith.divf %20, %21 : vector<8x96xf32>
    %23 = vector.extract_strided_slice %16 {offsets = [0, 96], sizes = [8, 64], strides = [1, 1]} : vector<8x160xf32> to vector<8x64xf32>
    %24 = math.tanh %23 : vector<8x64xf32>
    %25 = vector.extract_strided_slice %22 {offsets = [0, 0], sizes = [8, 32], strides = [1, 1]} : vector<8x96xf32> to vector<8x32xf32>
    %26 = vector.extract_strided_slice %22 {offsets = [0, 32], sizes = [8, 32], strides = [1, 1]} : vector<8x96xf32> to vector<8x32xf32>
    %27 = vector.extract_strided_slice %22 {offsets = [0, 64], sizes = [8, 32], strides = [1, 1]} : vector<8x96xf32> to vector<8x32xf32>
    %28 = vector.extract_strided_slice %24 {offsets = [0, 0], sizes = [8, 32], strides = [1, 1]} : vector<8x64xf32> to vector<8x32xf32>
    %29 = vector.extract_strided_slice %24 {offsets = [0, 32], sizes = [8, 32], strides = [1, 1]} : vector<8x64xf32> to vector<8x32xf32>
    %30 = arith.subf %11, %29 : vector<8x32xf32>
    %c0_18 = arith.constant 0 : index
    %c0_19 = arith.constant 0 : index
    %c0_20 = arith.constant 0 : index
    %31 = vector.load %arg2[%c0_18, %c0_19, %c0_20] : memref<8x8x1xf32, #tpu.memory_space<vmem>>, vector<1x8x1xf32>
    %32 = vector.shape_cast %31 : vector<1x8x1xf32> to vector<8x1xf32>
    %33 = vector.broadcast %32 : vector<8x1xf32> to vector<8x32xf32>
    %34 = arith.mulf %29, %33 : vector<8x32xf32>
    %35 = arith.addf %30, %34 : vector<8x32xf32>
    %36 = arith.mulf %25, %35 : vector<8x32xf32>
    %37 = arith.mulf %26, %28 : vector<8x32xf32>
    %38 = arith.addf %36, %37 : vector<8x32xf32>
    %39 = math.tanh %38 : vector<8x32xf32>
    %40 = arith.mulf %27, %39 : vector<8x32xf32>
    %c0_21 = arith.constant 0 : index
    %c0_22 = arith.constant 0 : index
    %c0_23 = arith.constant 0 : index
    %41 = vector.load %arg13[%c0_21, %c0_22, %c0_23] : memref<8x8x32xf32, #tpu.memory_space<vmem>>, vector<1x8x32xf32>
    %42 = vector.shape_cast %41 : vector<1x8x32xf32> to vector<8x32xf32>
    %43 = vector.shape_cast %40 : vector<8x32xf32> to vector<1x8x32xf32>
    tpu.vector_store %arg13[%c0_21, %c0_22, %c0_23], %43 {strides = array<i32>} : memref<8x8x32xf32, #tpu.memory_space<vmem>>, vector<1x8x32xf32>,
    %44 = tpu.concatenate %40, %38 in 1 : vector<8x32xf32>, vector<8x32xf32> -> vector<8x64xf32>
    %c1 = arith.constant 1 : index
    %c0_24 = arith.constant 0 : index
    %c0_25 = arith.constant 0 : index
    %45 = vector.load %arg12[%c1, %c0_24, %c0_25] : memref<8x8x160xf32, #tpu.memory_space<vmem>>, vector<1x8x160xf32>
    %46 = vector.shape_cast %45 : vector<1x8x160xf32> to vector<8x160xf32>
    %cst_26 = arith.constant dense<0.000000e+00> : vector<8x160xf32>
    %47 = tpu.matmul %44, %9, %cst_26 {dimension_numbers = #tpu.dot_dimension_numbers<[1], [0], [0], [1], [0, 0, 1, 1], [], []>} : vector<8x64xf32>, vector<64x160xf32>, vector<8x160xf32> -> vector<8x160xf32>
    %48 = arith.addf %46, %47 : vector<8x160xf32>
    %49 = vector.extract_strided_slice %48 {offsets = [0, 0], sizes = [8, 96], strides = [1, 1]} : vector<8x160xf32> to vector<8x96xf32>
    %50 = arith.negf %49 : vector<8x96xf32>
    %51 = math.exp %50 : vector<8x96xf32>
    %cst_27 = arith.constant 1.000000e+00 : f32
    %52 = vector.broadcast %cst_27 : f32 to vector<8x96xf32>
    %53 = arith.addf %52, %51 : vector<8x96xf32>
    %54 = arith.divf %52, %53 : vector<8x96xf32>
    %55 = vector.extract_strided_slice %48 {offsets = [0, 96], sizes = [8, 64], strides = [1, 1]} : vector<8x160xf32> to vector<8x64xf32>
    %56 = math.tanh %55 : vector<8x64xf32>
    %57 = vector.extract_strided_slice %54 {offsets = [0, 0], sizes = [8, 32], strides = [1, 1]} : vector<8x96xf32> to vector<8x32xf32>
    %58 = vector.extract_strided_slice %54 {offsets = [0, 32], sizes = [8, 32], strides = [1, 1]} : vector<8x96xf32> to vector<8x32xf32>
    %59 = vector.extract_strided_slice %54 {offsets = [0, 64], sizes = [8, 32], strides = [1, 1]} : vector<8x96xf32> to vector<8x32xf32>
    %60 = vector.extract_strided_slice %56 {offsets = [0, 0], sizes = [8, 32], strides = [1, 1]} : vector<8x64xf32> to vector<8x32xf32>
    %61 = vector.extract_strided_slice %56 {offsets = [0, 32], sizes = [8, 32], strides = [1, 1]} : vector<8x64xf32> to vector<8x32xf32>
    %62 = arith.subf %38, %61 : vector<8x32xf32>
    %c1_28 = arith.constant 1 : index
    %c0_29 = arith.constant 0 : index
    %c0_30 = arith.constant 0 : index
    %63 = vector.load %arg2[%c1_28, %c0_29, %c0_30] : memref<8x8x1xf32, #tpu.memory_space<vmem>>, vector<1x8x1xf32>
    %64 = vector.shape_cast %63 : vector<1x8x1xf32> to vector<8x1xf32>
    %65 = vector.broadcast %64 : vector<8x1xf32> to vector<8x32xf32>
    %66 = arith.mulf %61, %65 : vector<8x32xf32>
    %67 = arith.addf %62, %66 : vector<8x32xf32>
    %68 = arith.mulf %57, %67 : vector<8x32xf32>
    %69 = arith.mulf %58, %60 : vector<8x32xf32>
    %70 = arith.addf %68, %69 : vector<8x32xf32>
    %71 = math.tanh %70 : vector<8x32xf32>
    %72 = arith.mulf %59, %71 : vector<8x32xf32>
    %c1_31 = arith.constant 1 : index
    %c0_32 = arith.constant 0 : index
    %c0_33 = arith.constant 0 : index
    %73 = vector.load %arg13[%c1_31, %c0_32, %c0_33] : memref<8x8x32xf32, #tpu.memory_space<vmem>>, vector<1x8x32xf32>
    %74 = vector.shape_cast %73 : vector<1x8x32xf32> to vector<8x32xf32>
    %75 = vector.shape_cast %72 : vector<8x32xf32> to vector<1x8x32xf32>
    tpu.vector_store %arg13[%c1_31, %c0_32, %c0_33], %75 {strides = array<i32>} : memref<8x8x32xf32, #tpu.memory_space<vmem>>, vector<1x8x32xf32>,
    %76 = tpu.concatenate %72, %70 in 1 : vector<8x32xf32>, vector<8x32xf32> -> vector<8x64xf32>
    %c2 = arith.constant 2 : index
    %c0_34 = arith.constant 0 : index
    %c0_35 = arith.constant 0 : index
    %77 = vector.load %arg12[%c2, %c0_34, %c0_35] : memref<8x8x160xf32, #tpu.memory_space<vmem>>, vector<1x8x160xf32>
    %78 = vector.shape_cast %77 : vector<1x8x160xf32> to vector<8x160xf32>
    %cst_36 = arith.constant dense<0.000000e+00> : vector<8x160xf32>
    %79 = tpu.matmul %76, %9, %cst_36 {dimension_numbers = #tpu.dot_dimension_numbers<[1], [0], [0], [1], [0, 0, 1, 1], [], []>} : vector<8x64xf32>, vector<64x160xf32>, vector<8x160xf32> -> vector<8x160xf32>
    %80 = arith.addf %78, %79 : vector<8x160xf32>
    %81 = vector.extract_strided_slice %80 {offsets = [0, 0], sizes = [8, 96], strides = [1, 1]} : vector<8x160xf32> to vector<8x96xf32>
    %82 = arith.negf %81 : vector<8x96xf32>
    %83 = math.exp %82 : vector<8x96xf32>
    %cst_37 = arith.constant 1.000000e+00 : f32
    %84 = vector.broadcast %cst_37 : f32 to vector<8x96xf32>
    %85 = arith.addf %84, %83 : vector<8x96xf32>
    %86 = arith.divf %84, %85 : vector<8x96xf32>
    %87 = vector.extract_strided_slice %80 {offsets = [0, 96], sizes = [8, 64], strides = [1, 1]} : vector<8x160xf32> to vector<8x64xf32>
    %88 = math.tanh %87 : vector<8x64xf32>
    %89 = vector.extract_strided_slice %86 {offsets = [0, 0], sizes = [8, 32], strides = [1, 1]} : vector<8x96xf32> to vector<8x32xf32>
    %90 = vector.extract_strided_slice %86 {offsets = [0, 32], sizes = [8, 32], strides = [1, 1]} : vector<8x96xf32> to vector<8x32xf32>
    %91 = vector.extract_strided_slice %86 {offsets = [0, 64], sizes = [8, 32], strides = [1, 1]} : vector<8x96xf32> to vector<8x32xf32>
    %92 = vector.extract_strided_slice %88 {offsets = [0, 0], sizes = [8, 32], strides = [1, 1]} : vector<8x64xf32> to vector<8x32xf32>
    %93 = vector.extract_strided_slice %88 {offsets = [0, 32], sizes = [8, 32], strides = [1, 1]} : vector<8x64xf32> to vector<8x32xf32>
    %94 = arith.subf %70, %93 : vector<8x32xf32>
    %c2_38 = arith.constant 2 : index
    %c0_39 = arith.constant 0 : index
    %c0_40 = arith.constant 0 : index
    %95 = vector.load %arg2[%c2_38, %c0_39, %c0_40] : memref<8x8x1xf32, #tpu.memory_space<vmem>>, vector<1x8x1xf32>
    %96 = vector.shape_cast %95 : vector<1x8x1xf32> to vector<8x1xf32>
    %97 = vector.broadcast %96 : vector<8x1xf32> to vector<8x32xf32>
    %98 = arith.mulf %93, %97 : vector<8x32xf32>
    %99 = arith.addf %94, %98 : vector<8x32xf32>
    %100 = arith.mulf %89, %99 : vector<8x32xf32>
    %101 = arith.mulf %90, %92 : vector<8x32xf32>
    %102 = arith.addf %100, %101 : vector<8x32xf32>
    %103 = math.tanh %102 : vector<8x32xf32>
    %104 = arith.mulf %91, %103 : vector<8x32xf32>
    %c2_41 = arith.constant 2 : index
    %c0_42 = arith.constant 0 : index
    %c0_43 = arith.constant 0 : index
    %105 = vector.load %arg13[%c2_41, %c0_42, %c0_43] : memref<8x8x32xf32, #tpu.memory_space<vmem>>, vector<1x8x32xf32>
    %106 = vector.shape_cast %105 : vector<1x8x32xf32> to vector<8x32xf32>
    %107 = vector.shape_cast %104 : vector<8x32xf32> to vector<1x8x32xf32>
    tpu.vector_store %arg13[%c2_41, %c0_42, %c0_43], %107 {strides = array<i32>} : memref<8x8x32xf32, #tpu.memory_space<vmem>>, vector<1x8x32xf32>,
    %108 = tpu.concatenate %104, %102 in 1 : vector<8x32xf32>, vector<8x32xf32> -> vector<8x64xf32>
    %c3 = arith.constant 3 : index
    %c0_44 = arith.constant 0 : index
    %c0_45 = arith.constant 0 : index
    %109 = vector.load %arg12[%c3, %c0_44, %c0_45] : memref<8x8x160xf32, #tpu.memory_space<vmem>>, vector<1x8x160xf32>
    %110 = vector.shape_cast %109 : vector<1x8x160xf32> to vector<8x160xf32>
    %cst_46 = arith.constant dense<0.000000e+00> : vector<8x160xf32>
    %111 = tpu.matmul %108, %9, %cst_46 {dimension_numbers = #tpu.dot_dimension_numbers<[1], [0], [0], [1], [0, 0, 1, 1], [], []>} : vector<8x64xf32>, vector<64x160xf32>, vector<8x160xf32> -> vector<8x160xf32>
    %112 = arith.addf %110, %111 : vector<8x160xf32>
    %113 = vector.extract_strided_slice %112 {offsets = [0, 0], sizes = [8, 96], strides = [1, 1]} : vector<8x160xf32> to vector<8x96xf32>
    %114 = arith.negf %113 : vector<8x96xf32>
    %115 = math.exp %114 : vector<8x96xf32>
    %cst_47 = arith.constant 1.000000e+00 : f32
    %116 = vector.broadcast %cst_47 : f32 to vector<8x96xf32>
    %117 = arith.addf %116, %115 : vector<8x96xf32>
    %118 = arith.divf %116, %117 : vector<8x96xf32>
    %119 = vector.extract_strided_slice %112 {offsets = [0, 96], sizes = [8, 64], strides = [1, 1]} : vector<8x160xf32> to vector<8x64xf32>
    %120 = math.tanh %119 : vector<8x64xf32>
    %121 = vector.extract_strided_slice %118 {offsets = [0, 0], sizes = [8, 32], strides = [1, 1]} : vector<8x96xf32> to vector<8x32xf32>
    %122 = vector.extract_strided_slice %118 {offsets = [0, 32], sizes = [8, 32], strides = [1, 1]} : vector<8x96xf32> to vector<8x32xf32>
    %123 = vector.extract_strided_slice %118 {offsets = [0, 64], sizes = [8, 32], strides = [1, 1]} : vector<8x96xf32> to vector<8x32xf32>
    %124 = vector.extract_strided_slice %120 {offsets = [0, 0], sizes = [8, 32], strides = [1, 1]} : vector<8x64xf32> to vector<8x32xf32>
    %125 = vector.extract_strided_slice %120 {offsets = [0, 32], sizes = [8, 32], strides = [1, 1]} : vector<8x64xf32> to vector<8x32xf32>
    %126 = arith.subf %102, %125 : vector<8x32xf32>
    %c3_48 = arith.constant 3 : index
    %c0_49 = arith.constant 0 : index
    %c0_50 = arith.constant 0 : index
    %127 = vector.load %arg2[%c3_48, %c0_49, %c0_50] : memref<8x8x1xf32, #tpu.memory_space<vmem>>, vector<1x8x1xf32>
    %128 = vector.shape_cast %127 : vector<1x8x1xf32> to vector<8x1xf32>
    %129 = vector.broadcast %128 : vector<8x1xf32> to vector<8x32xf32>
    %130 = arith.mulf %125, %129 : vector<8x32xf32>
    %131 = arith.addf %126, %130 : vector<8x32xf32>
    %132 = arith.mulf %121, %131 : vector<8x32xf32>
    %133 = arith.mulf %122, %124 : vector<8x32xf32>
    %134 = arith.addf %132, %133 : vector<8x32xf32>
    %135 = math.tanh %134 : vector<8x32xf32>
    %136 = arith.mulf %123, %135 : vector<8x32xf32>
    %c3_51 = arith.constant 3 : index
    %c0_52 = arith.constant 0 : index
    %c0_53 = arith.constant 0 : index
    %137 = vector.load %arg13[%c3_51, %c0_52, %c0_53] : memref<8x8x32xf32, #tpu.memory_space<vmem>>, vector<1x8x32xf32>
    %138 = vector.shape_cast %137 : vector<1x8x32xf32> to vector<8x32xf32>
    %139 = vector.shape_cast %136 : vector<8x32xf32> to vector<1x8x32xf32>
    tpu.vector_store %arg13[%c3_51, %c0_52, %c0_53], %139 {strides = array<i32>} : memref<8x8x32xf32, #tpu.memory_space<vmem>>, vector<1x8x32xf32>,
    %140 = tpu.concatenate %136, %134 in 1 : vector<8x32xf32>, vector<8x32xf32> -> vector<8x64xf32>
    %c4 = arith.constant 4 : index
    %c0_54 = arith.constant 0 : index
    %c0_55 = arith.constant 0 : index
    %141 = vector.load %arg12[%c4, %c0_54, %c0_55] : memref<8x8x160xf32, #tpu.memory_space<vmem>>, vector<1x8x160xf32>
    %142 = vector.shape_cast %141 : vector<1x8x160xf32> to vector<8x160xf32>
    %cst_56 = arith.constant dense<0.000000e+00> : vector<8x160xf32>
    %143 = tpu.matmul %140, %9, %cst_56 {dimension_numbers = #tpu.dot_dimension_numbers<[1], [0], [0], [1], [0, 0, 1, 1], [], []>} : vector<8x64xf32>, vector<64x160xf32>, vector<8x160xf32> -> vector<8x160xf32>
    %144 = arith.addf %142, %143 : vector<8x160xf32>
    %145 = vector.extract_strided_slice %144 {offsets = [0, 0], sizes = [8, 96], strides = [1, 1]} : vector<8x160xf32> to vector<8x96xf32>
    %146 = arith.negf %145 : vector<8x96xf32>
    %147 = math.exp %146 : vector<8x96xf32>
    %cst_57 = arith.constant 1.000000e+00 : f32
    %148 = vector.broadcast %cst_57 : f32 to vector<8x96xf32>
    %149 = arith.addf %148, %147 : vector<8x96xf32>
    %150 = arith.divf %148, %149 : vector<8x96xf32>
    %151 = vector.extract_strided_slice %144 {offsets = [0, 96], sizes = [8, 64], strides = [1, 1]} : vector<8x160xf32> to vector<8x64xf32>
    %152 = math.tanh %151 : vector<8x64xf32>
    %153 = vector.extract_strided_slice %150 {offsets = [0, 0], sizes = [8, 32], strides = [1, 1]} : vector<8x96xf32> to vector<8x32xf32>
    %154 = vector.extract_strided_slice %150 {offsets = [0, 32], sizes = [8, 32], strides = [1, 1]} : vector<8x96xf32> to vector<8x32xf32>
    %155 = vector.extract_strided_slice %150 {offsets = [0, 64], sizes = [8, 32], strides = [1, 1]} : vector<8x96xf32> to vector<8x32xf32>
    %156 = vector.extract_strided_slice %152 {offsets = [0, 0], sizes = [8, 32], strides = [1, 1]} : vector<8x64xf32> to vector<8x32xf32>
    %157 = vector.extract_strided_slice %152 {offsets = [0, 32], sizes = [8, 32], strides = [1, 1]} : vector<8x64xf32> to vector<8x32xf32>
    %158 = arith.subf %134, %157 : vector<8x32xf32>
    %c4_58 = arith.constant 4 : index
    %c0_59 = arith.constant 0 : index
    %c0_60 = arith.constant 0 : index
    %159 = vector.load %arg2[%c4_58, %c0_59, %c0_60] : memref<8x8x1xf32, #tpu.memory_space<vmem>>, vector<1x8x1xf32>
    %160 = vector.shape_cast %159 : vector<1x8x1xf32> to vector<8x1xf32>
    %161 = vector.broadcast %160 : vector<8x1xf32> to vector<8x32xf32>
    %162 = arith.mulf %157, %161 : vector<8x32xf32>
    %163 = arith.addf %158, %162 : vector<8x32xf32>
    %164 = arith.mulf %153, %163 : vector<8x32xf32>
    %165 = arith.mulf %154, %156 : vector<8x32xf32>
    %166 = arith.addf %164, %165 : vector<8x32xf32>
    %167 = math.tanh %166 : vector<8x32xf32>
    %168 = arith.mulf %155, %167 : vector<8x32xf32>
    %c4_61 = arith.constant 4 : index
    %c0_62 = arith.constant 0 : index
    %c0_63 = arith.constant 0 : index
    %169 = vector.load %arg13[%c4_61, %c0_62, %c0_63] : memref<8x8x32xf32, #tpu.memory_space<vmem>>, vector<1x8x32xf32>
    %170 = vector.shape_cast %169 : vector<1x8x32xf32> to vector<8x32xf32>
    %171 = vector.shape_cast %168 : vector<8x32xf32> to vector<1x8x32xf32>
    tpu.vector_store %arg13[%c4_61, %c0_62, %c0_63], %171 {strides = array<i32>} : memref<8x8x32xf32, #tpu.memory_space<vmem>>, vector<1x8x32xf32>,
    %172 = tpu.concatenate %168, %166 in 1 : vector<8x32xf32>, vector<8x32xf32> -> vector<8x64xf32>
    %c5 = arith.constant 5 : index
    %c0_64 = arith.constant 0 : index
    %c0_65 = arith.constant 0 : index
    %173 = vector.load %arg12[%c5, %c0_64, %c0_65] : memref<8x8x160xf32, #tpu.memory_space<vmem>>, vector<1x8x160xf32>
    %174 = vector.shape_cast %173 : vector<1x8x160xf32> to vector<8x160xf32>
    %cst_66 = arith.constant dense<0.000000e+00> : vector<8x160xf32>
    %175 = tpu.matmul %172, %9, %cst_66 {dimension_numbers = #tpu.dot_dimension_numbers<[1], [0], [0], [1], [0, 0, 1, 1], [], []>} : vector<8x64xf32>, vector<64x160xf32>, vector<8x160xf32> -> vector<8x160xf32>
    %176 = arith.addf %174, %175 : vector<8x160xf32>
    %177 = vector.extract_strided_slice %176 {offsets = [0, 0], sizes = [8, 96], strides = [1, 1]} : vector<8x160xf32> to vector<8x96xf32>
    %178 = arith.negf %177 : vector<8x96xf32>
    %179 = math.exp %178 : vector<8x96xf32>
    %cst_67 = arith.constant 1.000000e+00 : f32
    %180 = vector.broadcast %cst_67 : f32 to vector<8x96xf32>
    %181 = arith.addf %180, %179 : vector<8x96xf32>
    %182 = arith.divf %180, %181 : vector<8x96xf32>
    %183 = vector.extract_strided_slice %176 {offsets = [0, 96], sizes = [8, 64], strides = [1, 1]} : vector<8x160xf32> to vector<8x64xf32>
    %184 = math.tanh %183 : vector<8x64xf32>
    %185 = vector.extract_strided_slice %182 {offsets = [0, 0], sizes = [8, 32], strides = [1, 1]} : vector<8x96xf32> to vector<8x32xf32>
    %186 = vector.extract_strided_slice %182 {offsets = [0, 32], sizes = [8, 32], strides = [1, 1]} : vector<8x96xf32> to vector<8x32xf32>
    %187 = vector.extract_strided_slice %182 {offsets = [0, 64], sizes = [8, 32], strides = [1, 1]} : vector<8x96xf32> to vector<8x32xf32>
    %188 = vector.extract_strided_slice %184 {offsets = [0, 0], sizes = [8, 32], strides = [1, 1]} : vector<8x64xf32> to vector<8x32xf32>
    %189 = vector.extract_strided_slice %184 {offsets = [0, 32], sizes = [8, 32], strides = [1, 1]} : vector<8x64xf32> to vector<8x32xf32>
    %190 = arith.subf %166, %189 : vector<8x32xf32>
    %c5_68 = arith.constant 5 : index
    %c0_69 = arith.constant 0 : index
    %c0_70 = arith.constant 0 : index
    %191 = vector.load %arg2[%c5_68, %c0_69, %c0_70] : memref<8x8x1xf32, #tpu.memory_space<vmem>>, vector<1x8x1xf32>
    %192 = vector.shape_cast %191 : vector<1x8x1xf32> to vector<8x1xf32>
    %193 = vector.broadcast %192 : vector<8x1xf32> to vector<8x32xf32>
    %194 = arith.mulf %189, %193 : vector<8x32xf32>
    %195 = arith.addf %190, %194 : vector<8x32xf32>
    %196 = arith.mulf %185, %195 : vector<8x32xf32>
    %197 = arith.mulf %186, %188 : vector<8x32xf32>
    %198 = arith.addf %196, %197 : vector<8x32xf32>
    %199 = math.tanh %198 : vector<8x32xf32>
    %200 = arith.mulf %187, %199 : vector<8x32xf32>
    %c5_71 = arith.constant 5 : index
    %c0_72 = arith.constant 0 : index
    %c0_73 = arith.constant 0 : index
    %201 = vector.load %arg13[%c5_71, %c0_72, %c0_73] : memref<8x8x32xf32, #tpu.memory_space<vmem>>, vector<1x8x32xf32>
    %202 = vector.shape_cast %201 : vector<1x8x32xf32> to vector<8x32xf32>
    %203 = vector.shape_cast %200 : vector<8x32xf32> to vector<1x8x32xf32>
    tpu.vector_store %arg13[%c5_71, %c0_72, %c0_73], %203 {strides = array<i32>} : memref<8x8x32xf32, #tpu.memory_space<vmem>>, vector<1x8x32xf32>,
    %204 = tpu.concatenate %200, %198 in 1 : vector<8x32xf32>, vector<8x32xf32> -> vector<8x64xf32>
    %c6 = arith.constant 6 : index
    %c0_74 = arith.constant 0 : index
    %c0_75 = arith.constant 0 : index
    %205 = vector.load %arg12[%c6, %c0_74, %c0_75] : memref<8x8x160xf32, #tpu.memory_space<vmem>>, vector<1x8x160xf32>
    %206 = vector.shape_cast %205 : vector<1x8x160xf32> to vector<8x160xf32>
    %cst_76 = arith.constant dense<0.000000e+00> : vector<8x160xf32>
    %207 = tpu.matmul %204, %9, %cst_76 {dimension_numbers = #tpu.dot_dimension_numbers<[1], [0], [0], [1], [0, 0, 1, 1], [], []>} : vector<8x64xf32>, vector<64x160xf32>, vector<8x160xf32> -> vector<8x160xf32>
    %208 = arith.addf %206, %207 : vector<8x160xf32>
    %209 = vector.extract_strided_slice %208 {offsets = [0, 0], sizes = [8, 96], strides = [1, 1]} : vector<8x160xf32> to vector<8x96xf32>
    %210 = arith.negf %209 : vector<8x96xf32>
    %211 = math.exp %210 : vector<8x96xf32>
    %cst_77 = arith.constant 1.000000e+00 : f32
    %212 = vector.broadcast %cst_77 : f32 to vector<8x96xf32>
    %213 = arith.addf %212, %211 : vector<8x96xf32>
    %214 = arith.divf %212, %213 : vector<8x96xf32>
    %215 = vector.extract_strided_slice %208 {offsets = [0, 96], sizes = [8, 64], strides = [1, 1]} : vector<8x160xf32> to vector<8x64xf32>
    %216 = math.tanh %215 : vector<8x64xf32>
    %217 = vector.extract_strided_slice %214 {offsets = [0, 0], sizes = [8, 32], strides = [1, 1]} : vector<8x96xf32> to vector<8x32xf32>
    %218 = vector.extract_strided_slice %214 {offsets = [0, 32], sizes = [8, 32], strides = [1, 1]} : vector<8x96xf32> to vector<8x32xf32>
    %219 = vector.extract_strided_slice %214 {offsets = [0, 64], sizes = [8, 32], strides = [1, 1]} : vector<8x96xf32> to vector<8x32xf32>
    %220 = vector.extract_strided_slice %216 {offsets = [0, 0], sizes = [8, 32], strides = [1, 1]} : vector<8x64xf32> to vector<8x32xf32>
    %221 = vector.extract_strided_slice %216 {offsets = [0, 32], sizes = [8, 32], strides = [1, 1]} : vector<8x64xf32> to vector<8x32xf32>
    %222 = arith.subf %198, %221 : vector<8x32xf32>
    %c6_78 = arith.constant 6 : index
    %c0_79 = arith.constant 0 : index
    %c0_80 = arith.constant 0 : index
    %223 = vector.load %arg2[%c6_78, %c0_79, %c0_80] : memref<8x8x1xf32, #tpu.memory_space<vmem>>, vector<1x8x1xf32>
    %224 = vector.shape_cast %223 : vector<1x8x1xf32> to vector<8x1xf32>
    %225 = vector.broadcast %224 : vector<8x1xf32> to vector<8x32xf32>
    %226 = arith.mulf %221, %225 : vector<8x32xf32>
    %227 = arith.addf %222, %226 : vector<8x32xf32>
    %228 = arith.mulf %217, %227 : vector<8x32xf32>
    %229 = arith.mulf %218, %220 : vector<8x32xf32>
    %230 = arith.addf %228, %229 : vector<8x32xf32>
    %231 = math.tanh %230 : vector<8x32xf32>
    %232 = arith.mulf %219, %231 : vector<8x32xf32>
    %c6_81 = arith.constant 6 : index
    %c0_82 = arith.constant 0 : index
    %c0_83 = arith.constant 0 : index
    %233 = vector.load %arg13[%c6_81, %c0_82, %c0_83] : memref<8x8x32xf32, #tpu.memory_space<vmem>>, vector<1x8x32xf32>
    %234 = vector.shape_cast %233 : vector<1x8x32xf32> to vector<8x32xf32>
    %235 = vector.shape_cast %232 : vector<8x32xf32> to vector<1x8x32xf32>
    tpu.vector_store %arg13[%c6_81, %c0_82, %c0_83], %235 {strides = array<i32>} : memref<8x8x32xf32, #tpu.memory_space<vmem>>, vector<1x8x32xf32>,
    %236 = tpu.concatenate %232, %230 in 1 : vector<8x32xf32>, vector<8x32xf32> -> vector<8x64xf32>
    %c7 = arith.constant 7 : index
    %c0_84 = arith.constant 0 : index
    %c0_85 = arith.constant 0 : index
    %237 = vector.load %arg12[%c7, %c0_84, %c0_85] : memref<8x8x160xf32, #tpu.memory_space<vmem>>, vector<1x8x160xf32>
    %238 = vector.shape_cast %237 : vector<1x8x160xf32> to vector<8x160xf32>
    %cst_86 = arith.constant dense<0.000000e+00> : vector<8x160xf32>
    %239 = tpu.matmul %236, %9, %cst_86 {dimension_numbers = #tpu.dot_dimension_numbers<[1], [0], [0], [1], [0, 0, 1, 1], [], []>} : vector<8x64xf32>, vector<64x160xf32>, vector<8x160xf32> -> vector<8x160xf32>
    %240 = arith.addf %238, %239 : vector<8x160xf32>
    %241 = vector.extract_strided_slice %240 {offsets = [0, 0], sizes = [8, 96], strides = [1, 1]} : vector<8x160xf32> to vector<8x96xf32>
    %242 = arith.negf %241 : vector<8x96xf32>
    %243 = math.exp %242 : vector<8x96xf32>
    %cst_87 = arith.constant 1.000000e+00 : f32
    %244 = vector.broadcast %cst_87 : f32 to vector<8x96xf32>
    %245 = arith.addf %244, %243 : vector<8x96xf32>
    %246 = arith.divf %244, %245 : vector<8x96xf32>
    %247 = vector.extract_strided_slice %240 {offsets = [0, 96], sizes = [8, 64], strides = [1, 1]} : vector<8x160xf32> to vector<8x64xf32>
    %248 = math.tanh %247 : vector<8x64xf32>
    %249 = vector.extract_strided_slice %246 {offsets = [0, 0], sizes = [8, 32], strides = [1, 1]} : vector<8x96xf32> to vector<8x32xf32>
    %250 = vector.extract_strided_slice %246 {offsets = [0, 32], sizes = [8, 32], strides = [1, 1]} : vector<8x96xf32> to vector<8x32xf32>
    %251 = vector.extract_strided_slice %246 {offsets = [0, 64], sizes = [8, 32], strides = [1, 1]} : vector<8x96xf32> to vector<8x32xf32>
    %252 = vector.extract_strided_slice %248 {offsets = [0, 0], sizes = [8, 32], strides = [1, 1]} : vector<8x64xf32> to vector<8x32xf32>
    %253 = vector.extract_strided_slice %248 {offsets = [0, 32], sizes = [8, 32], strides = [1, 1]} : vector<8x64xf32> to vector<8x32xf32>
    %254 = arith.subf %230, %253 : vector<8x32xf32>
    %c7_88 = arith.constant 7 : index
    %c0_89 = arith.constant 0 : index
    %c0_90 = arith.constant 0 : index
    %255 = vector.load %arg2[%c7_88, %c0_89, %c0_90] : memref<8x8x1xf32, #tpu.memory_space<vmem>>, vector<1x8x1xf32>
    %256 = vector.shape_cast %255 : vector<1x8x1xf32> to vector<8x1xf32>
    %257 = vector.broadcast %256 : vector<8x1xf32> to vector<8x32xf32>
    %258 = arith.mulf %253, %257 : vector<8x32xf32>
    %259 = arith.addf %254, %258 : vector<8x32xf32>
    %260 = arith.mulf %249, %259 : vector<8x32xf32>
    %261 = arith.mulf %250, %252 : vector<8x32xf32>
    %262 = arith.addf %260, %261 : vector<8x32xf32>
    %263 = math.tanh %262 : vector<8x32xf32>
    %264 = arith.mulf %251, %263 : vector<8x32xf32>
    %c7_91 = arith.constant 7 : index
    %c0_92 = arith.constant 0 : index
    %c0_93 = arith.constant 0 : index
    %265 = vector.load %arg13[%c7_91, %c0_92, %c0_93] : memref<8x8x32xf32, #tpu.memory_space<vmem>>, vector<1x8x32xf32>
    %266 = vector.shape_cast %265 : vector<1x8x32xf32> to vector<8x32xf32>
    %267 = vector.shape_cast %264 : vector<8x32xf32> to vector<1x8x32xf32>
    tpu.vector_store %arg13[%c7_91, %c0_92, %c0_93], %267 {strides = array<i32>} : memref<8x8x32xf32, #tpu.memory_space<vmem>>, vector<1x8x32xf32>,
    %c0_94 = arith.constant 0 : index
    %c0_95 = arith.constant 0 : index
    %c0_96 = arith.constant 0 : index
    %268 = vector.load %arg13[%c0_94, %c0_95, %c0_96] : memref<8x8x32xf32, #tpu.memory_space<vmem>>, vector<8x8x32xf32>
    %269 = vector.shape_cast %268 : vector<8x8x32xf32> to vector<64x32xf32>
    %c0_97 = arith.constant 0 : index
    %c0_98 = arith.constant 0 : index
    %270 = vector.load %arg8[%c0_97, %c0_98] : memref<32x1xf32, #tpu.memory_space<vmem>>, vector<32x1xf32>
    %cst_99 = arith.constant dense<0.000000e+00> : vector<64x1xf32>
    %271 = tpu.matmul %269, %270, %cst_99 {dimension_numbers = #tpu.dot_dimension_numbers<[1], [0], [0], [1], [0, 0, 1, 1], [], []>} : vector<64x32xf32>, vector<32x1xf32>, vector<64x1xf32> -> vector<64x1xf32>
    %c0_100 = arith.constant 0 : index
    %c0_101 = arith.constant 0 : index
    %272 = vector.load %arg9[%c0_100, %c0_101] : memref<1x1xf32, #tpu.memory_space<vmem>>, vector<1x1xf32>
    %273 = vector.broadcast %272 : vector<1x1xf32> to vector<64x1xf32>
    %274 = arith.addf %271, %273 : vector<64x1xf32>
    %275 = vector.shape_cast %274 : vector<64x1xf32> to vector<8x8x1xf32>
    %c0_102 = arith.constant 0 : index
    %c0_103 = arith.constant 0 : index
    %c0_104 = arith.constant 0 : index
    %276 = vector.load %arg3[%c0_102, %c0_103, %c0_104] : memref<8x8x1xf32, #tpu.memory_space<vmem>>, vector<8x8x1xf32>
    %277 = arith.mulf %275, %276 : vector<8x8x1xf32>
    %c0_105 = arith.constant 0 : index
    %c0_106 = arith.constant 0 : index
    %c0_107 = arith.constant 0 : index
    %278 = vector.load %arg10[%c0_105, %c0_106, %c0_107] : memref<8x8x1xf32, #tpu.memory_space<vmem>>, vector<8x8x1xf32>
    tpu.vector_store %arg10[%c0_105, %c0_106, %c0_107], %277 {strides = array<i32>} : memref<8x8x1xf32, #tpu.memory_space<vmem>>, vector<8x8x1xf32>,
    %c0_108 = arith.constant 0 : index
    %c0_109 = arith.constant 0 : index
    %c0_110 = arith.constant 0 : index
    %279 = vector.load %arg4[%c0_108, %c0_109, %c0_110] : memref<8x8x1xf32, #tpu.memory_space<vmem>>, vector<8x8x1xf32>
    %280 = arith.mulf %277, %279 : vector<8x8x1xf32>
    %cst_111 = arith.constant dense<0.000000e+00> : vector<8x1xf32>
    %281 = vector.multi_reduction <add>, %280, %cst_111 [0] : vector<8x8x1xf32> to vector<8x1xf32>
    %c0_112 = arith.constant 0 : index
    %c0_113 = arith.constant 0 : index
    %282 = vector.load %arg11[%c0_112, %c0_113] : memref<8x1xf32, #tpu.memory_space<vmem>>, vector<8x1xf32>
    tpu.vector_store %arg11[%c0_112, %c0_113], %281 {strides = array<i32>} : memref<8x1xf32, #tpu.memory_space<vmem>>, vector<8x1xf32>,
    return
  }
  func.func @transform_0(%arg0: i32) -> (i32, i32, i32) {
    %c0_i32 = arith.constant 0 : i32
    %c0_i32_0 = arith.constant 0 : i32
    %c0_i32_1 = arith.constant 0 : i32
    return %c0_i32, %arg0, %c0_i32_0 : i32, i32, i32
  }
  func.func @transform_1(%arg0: i32) -> (i32, i32, i32) {
    %c0_i32 = arith.constant 0 : i32
    %c0_i32_0 = arith.constant 0 : i32
    %c0_i32_1 = arith.constant 0 : i32
    return %c0_i32, %arg0, %c0_i32_0 : i32, i32, i32
  }
  func.func @transform_2(%arg0: i32) -> (i32, i32, i32) {
    %c0_i32 = arith.constant 0 : i32
    %c0_i32_0 = arith.constant 0 : i32
    %c0_i32_1 = arith.constant 0 : i32
    return %c0_i32, %arg0, %c0_i32_0 : i32, i32, i32
  }
  func.func @transform_3(%arg0: i32) -> (i32, i32, i32) {
    %c0_i32 = arith.constant 0 : i32
    %c0_i32_0 = arith.constant 0 : i32
    %c0_i32_1 = arith.constant 0 : i32
    return %c0_i32, %arg0, %c0_i32_0 : i32, i32, i32
  }
  func.func @transform_4(%arg0: i32) -> (i32, i32) {
    %c0_i32 = arith.constant 0 : i32
    %c0_i32_0 = arith.constant 0 : i32
    %c0_i32_1 = arith.constant 0 : i32
    return %c0_i32, %c0_i32_0 : i32, i32
  }
  func.func @transform_5(%arg0: i32) -> (i32, i32) {
    %c0_i32 = arith.constant 0 : i32
    %c0_i32_0 = arith.constant 0 : i32
    %c0_i32_1 = arith.constant 0 : i32
    return %c0_i32, %c0_i32_0 : i32, i32
  }
  func.func @transform_6(%arg0: i32) -> (i32, i32) {
    %c0_i32 = arith.constant 0 : i32
    %c0_i32_0 = arith.constant 0 : i32
    %c0_i32_1 = arith.constant 0 : i32
    return %c0_i32, %c0_i32_0 : i32, i32
  }
  func.func @transform_7(%arg0: i32) -> (i32, i32) {
    %c0_i32 = arith.constant 0 : i32
    %c0_i32_0 = arith.constant 0 : i32
    %c0_i32_1 = arith.constant 0 : i32
    return %c0_i32, %c0_i32_0 : i32, i32
  }
  func.func @transform_8(%arg0: i32) -> (i32, i32) {
    %c0_i32 = arith.constant 0 : i32
    %c0_i32_0 = arith.constant 0 : i32
    %c0_i32_1 = arith.constant 0 : i32
    return %c0_i32, %c0_i32_0 : i32, i32
  }
  func.func @transform_9(%arg0: i32) -> (i32, i32, i32) {
    %c0_i32 = arith.constant 0 : i32
    %c0_i32_0 = arith.constant 0 : i32
    %c0_i32_1 = arith.constant 0 : i32
    return %c0_i32, %arg0, %c0_i32_0 : i32, i32, i32
  }
  func.func @transform_10(%arg0: i32) -> (i32, i32) {
    %c0_i32 = arith.constant 0 : i32
    %c0_i32_0 = arith.constant 0 : i32
    return %arg0, %c0_i32 : i32, i32
  }
}

</mosaic_0001>

<llo_original>
// kernel: tpu_custom_call.1
$region0: #{tpu_custom_call.1}
  #allocation0 [shape = 'u32[]', space=smem, size = 0x4, offset = 0x4, fixed_abs, tag = 'smem constant byte address 0x4 - core index']
  #allocation1 [shape = 'u32[72,128]{1,0:T(1,128)}', space=vmem, size = 0x9000, scoped, tag = 'internal scratch']
  #allocation2 [shape = 'f32[8,8,160]{2,1,0:T(8,128)}', space=vmem, size = 0x10000, scoped, tag = 'scratch operand']
  #allocation3 [shape = 'f32[8,8,32]{2,1,0:T(8,128)}', space=vmem, size = 0x8000, scoped, tag = 'scratch operand']
  #allocation4 [shape = 'f32[1,1]{1,0:T(1,128)S(1)}', space=vmem, size = 0x200, scoped, tag = 'scoped memory for tpu_custom_call.1']
  %s0 = inlined_call_operand.vmem [shape: f32[8,8,16], index: 0, kind: input, shape index: {}]
  %s1 = inlined_call_operand.vmem [shape: f32[8,8,1], index: 1, kind: input, shape index: {}]
  %s2 = inlined_call_operand.vmem [shape: f32[8,8,1], index: 2, kind: input, shape index: {}]
  %s3 = inlined_call_operand.vmem [shape: f32[8,8,1], index: 3, kind: input, shape index: {}]
  %s4 = inlined_call_operand.hbm [shape: f32[16,160], index: 4, kind: input, shape index: {}]
  %s5 = inlined_call_operand.vmem [shape: f32[1,160], index: 5, kind: input, shape index: {}]
  %s6 = inlined_call_operand.vmem [shape: f32[64,160], index: 6, kind: input, shape index: {}]
  %s7 = inlined_call_operand.vmem [shape: f32[32,1], index: 7, kind: input, shape index: {}]
  %s8 = inlined_call_operand.<no memory space> [shape: f32[1,1], index: 8, kind: input, shape index: {}]
  %s9 = inlined_call_operand.vmem [shape: f32[8,8,1], index: 9, kind: output, shape index: {0}]
  %s10 = inlined_call_operand.vmem [shape: f32[8,1], index: 10, kind: output, shape index: {1}]
  %11 = xla_tuple %s9, %s10
  %s12 = sld [smem:[#allocation0]]
  $region58: #{tpu_custom_call.1} parent=0
    _
  %s14 = ssub.s32 1, %s12
  %s15 = scalar_select 0, %s14, %s12
  %v16 = vstv %s8
  %17 = vst [vmem:[#allocation4] sm:$0x1] %v16
  $region1: #{tpu_custom_call.1} parent=0
    #allocation5 [shape = 'u8[16384]{0}', space=vmem, size = 0x4000, scoped, tag = 'input window, operand 4, single buffered']
    #allocation6 [shape = 's32[1]{0}', space=sflag, size = 0x4, scoped, tag = 'scoped memory for tpu_custom_call.1']
    %18 = vsyncpa [#allocation6], 0
    // Predicated region
    $region2: #{tpu_custom_call.1} parent=1 // pred_check
      _
    $region3: #{tpu_custom_call.1} parent=1 // pred_check_branch
      %20 = sbr.rel (0) target = $region5
    $region4: #{tpu_custom_call.1} parent=1 // pred_region
      _
    $region5: #{tpu_custom_call.1} parent=1 // pred_fallthru
      _
    // Predicated region
    $region6: #{tpu_custom_call.1} parent=1 // pred_check
      _
    $region7: #{tpu_custom_call.1} parent=1 // pred_check_branch
      %22 = sbr.rel (0) target = $region9
    $region8: #{tpu_custom_call.1} parent=1 // pred_region
      _
    $region9: #{tpu_custom_call.1} parent=1 // pred_fallthru
      _
    // Predicated region
    $region10: #{tpu_custom_call.1} parent=1 // pred_check
      _
    $region11: #{tpu_custom_call.1} parent=1 // pred_check_branch
      %24 = sbr.rel (0) target = $region13
    $region12: #{tpu_custom_call.1} parent=1 // pred_region
      _
    $region13: #{tpu_custom_call.1} parent=1 // pred_fallthru
      _
    // Predicated region
    $region14: #{tpu_custom_call.1} parent=1 // pred_check
      _
    $region15: #{tpu_custom_call.1} parent=1 // pred_check_branch
      %26 = sbr.rel (0) target = $region17
    $region16: #{tpu_custom_call.1} parent=1 // pred_region
      _
    $region17: #{tpu_custom_call.1} parent=1 // pred_fallthru
      _
    // Predicated region
    $region18: #{tpu_custom_call.1} parent=1 // pred_check
      _
    $region19: #{tpu_custom_call.1} parent=1 // pred_check_branch
      %28 = sbr.rel (0) target = $region21
    $region20: #{tpu_custom_call.1} parent=1 // pred_region
      %30 = vsyncadd [#allocation6], 0
      %s31 = sshll.u32 %s4, 4
      %s32 = int_to_ptr.hbm [resolvable:$true] %s31
      %s33 = sshll.u32 [#allocation5], 4
      %s34 = int_to_ptr.vmem [resolvable:$true] %s33
      %39 = dma.hbm_to_vmem [thread:$0]  %s32, 512, %s34, [#allocation6], 256, 256, 16
    $region21: #{tpu_custom_call.1} parent=1 // pred_fallthru
      _
    // Predicated region
    $region22: #{tpu_custom_call.1} parent=1 // pred_check
      _
    $region23: #{tpu_custom_call.1} parent=1 // pred_check_branch
      %41 = sbr.rel (0) target = $region25
    $region24: #{tpu_custom_call.1} parent=1 // pred_region
      _
    $region25: #{tpu_custom_call.1} parent=1 // pred_fallthru
      _
    // Predicated region
    $region26: #{tpu_custom_call.1} parent=1 // pred_check
      _
    $region27: #{tpu_custom_call.1} parent=1 // pred_check_branch
      %43 = sbr.rel (0) target = $region29
    $region28: #{tpu_custom_call.1} parent=1 // pred_region
      _
    $region29: #{tpu_custom_call.1} parent=1 // pred_fallthru
      _
    // Predicated region
    $region30: #{tpu_custom_call.1} parent=1 // pred_check
      _
    $region31: #{tpu_custom_call.1} parent=1 // pred_check_branch
      %45 = sbr.rel (0) target = $region33
    $region32: #{tpu_custom_call.1} parent=1 // pred_region
      _
    $region33: #{tpu_custom_call.1} parent=1 // pred_fallthru
      _
    // Predicated region
    $region34: #{tpu_custom_call.1} parent=1 // pred_check
      _
    $region35: #{tpu_custom_call.1} parent=1 // pred_check_branch
      %47 = sbr.rel (0) target = $region37
    $region36: #{tpu_custom_call.1} parent=1 // pred_region
      _
    $region37: #{tpu_custom_call.1} parent=1 // pred_fallthru
      _
    // Predicated region
    $region38: #{tpu_custom_call.1} parent=1 // pred_check
      _
    $region39: #{tpu_custom_call.1} parent=1 // pred_check_branch
      %49 = sbr.rel (0) target = $region41
    $region40: #{tpu_custom_call.1} parent=1 // pred_region
      %51 = dma.done [#allocation6], 512
    $region41: #{tpu_custom_call.1} parent=1 // pred_fallthru
      _
    %v52 = vld [vmem:[%s0] sm:$0xff]
    %v53 = vld [vmem:[%s0 + $0x8] sm:$0xff]
    %v54 = vld [vmem:[%s0 + $0x10] sm:$0xff]
    %v55 = vld [vmem:[%s0 + $0x18] sm:$0xff]
    %v56 = vld [vmem:[%s0 + $0x20] sm:$0xff]
    %v57 = vld [vmem:[%s0 + $0x28] sm:$0xff]
    %v58 = vld [vmem:[%s0 + $0x30] sm:$0xff]
    %v59 = vld [vmem:[%s0 + $0x38] sm:$0xff]
    %v60 = vld [vmem:[#allocation5] sm:$0xff]
    %v61 = vld [vmem:[#allocation5 + $0x8] sm:$0xff]
    %v62 = vld [vmem:[#allocation5 + $0x10] sm:$0xff]
    %v63 = vld [vmem:[#allocation5 + $0x18] sm:$0xff]
    %v64 = vld [vmem:[%s5] sm:$0x3]
    %v66 = vperm.slane %v64, 0
    %v67 = vperm.slane %v64, 1
    %vm70 = vcmask 130048
    %v72 = vsel %vm70, %v52, 0
    %v75 = vsel %vm70, %v53, 0
    %v78 = vsel %vm70, %v54, 0
    %v81 = vsel %vm70, %v55, 0
    %v84 = vsel %vm70, %v56, 0
    %v87 = vsel %vm70, %v57, 0
    %v90 = vsel %vm70, %v58, 0
    %v93 = vsel %vm70, %v59, 0
    %95 = vmatpush.msra.mxu0 0.0
    %96 = vmatpush.msra.mxu0 0.0
    %97 = vmatpush.msra.mxu0 0.0
    %98 = vmatpush.msra.mxu0 0.0
    %99 = vmatpush.msra.mxu0 0.0
    %100 = vmatpush.msra.mxu0 0.0
    %101 = vmatpush.msra.mxu0 0.0
    %102 = vmatpush.msra.mxu0 0.0
    %103 = vmatpush.msra.mxu0 0.0
    %104 = vmatpush.msra.mxu0 0.0
    %105 = vmatpush.msra.mxu0 0.0
    %106 = vmatpush.msra.mxu0 0.0
    %107 = vmatpush.msra.mxu0 0.0
    %108 = vmatpush.msra.mxu0 0.0
    %109 = vmatpush.msra.mxu0 %v62
    %110 = vmatpush.msra.mxu0 %v60
    %111 = vmatmul.f32.gmra.mxu0 %v72
    %v112 = vpop.f32.mrf.mxu0
    %v113 = vadd.f32 %v66, %v112
    %114 = vmatmul.f32.gmra.mxu0 %v75
    %v115 = vpop.f32.mrf.mxu0
    %v116 = vadd.f32 %v66, %v115
    %117 = vmatmul.f32.gmra.mxu0 %v78
    %v118 = vpop.f32.mrf.mxu0
    %v119 = vadd.f32 %v66, %v118
    %120 = vmatmul.f32.gmra.mxu0 %v81
    %v121 = vpop.f32.mrf.mxu0
    %v122 = vadd.f32 %v66, %v121
    %123 = vmatmul.f32.gmra.mxu0 %v84
    %v124 = vpop.f32.mrf.mxu0
    %v125 = vadd.f32 %v66, %v124
    %126 = vmatmul.f32.gmra.mxu0 %v87
    %v127 = vpop.f32.mrf.mxu0
    %v128 = vadd.f32 %v66, %v127
    %129 = vmatmul.f32.gmra.mxu0 %v90
    %v130 = vpop.f32.mrf.mxu0
    %v131 = vadd.f32 %v66, %v130
    %132 = vmatmul.f32.gmra.mxu0 %v93
    %v133 = vpop.f32.mrf.mxu0
    %v134 = vadd.f32 %v66, %v133
    %135 = vdwg.mxu0
    %136 = vmatpush.msra.mxu0 0.0
    %137 = vmatpush.msra.mxu0 0.0
    %138 = vmatpush.msra.mxu0 0.0
    %139 = vmatpush.msra.mxu0 0.0
    %140 = vmatpush.msra.mxu0 0.0
    %141 = vmatpush.msra.mxu0 0.0
    %142 = vmatpush.msra.mxu0 0.0
    %143 = vmatpush.msra.mxu0 0.0
    %144 = vmatpush.msra.mxu0 0.0
    %145 = vmatpush.msra.mxu0 0.0
    %146 = vmatpush.msra.mxu0 0.0
    %147 = vmatpush.msra.mxu0 0.0
    %148 = vmatpush.msra.mxu0 0.0
    %149 = vmatpush.msra.mxu0 0.0
    %150 = vmatpush.msra.mxu0 %v63
    %151 = vmatpush.msra.mxu0 %v61
    %152 = vmatmul.f32.gmra.mxu0 %v72
    %v153 = vpop.f32.mrf.mxu0
    %v154 = vadd.f32 %v67, %v153
    %155 = vmatmul.f32.gmra.mxu0 %v75
    %v156 = vpop.f32.mrf.mxu0
    %v157 = vadd.f32 %v67, %v156
    %158 = vmatmul.f32.gmra.mxu0 %v78
    %v159 = vpop.f32.mrf.mxu0
    %v160 = vadd.f32 %v67, %v159
    %161 = vmatmul.f32.gmra.mxu0 %v81
    %v162 = vpop.f32.mrf.mxu0
    %v163 = vadd.f32 %v67, %v162
    %164 = vmatmul.f32.gmra.mxu0 %v84
    %v165 = vpop.f32.mrf.mxu0
    %v166 = vadd.f32 %v67, %v165
    %167 = vmatmul.f32.gmra.mxu0 %v87
    %v168 = vpop.f32.mrf.mxu0
    %v169 = vadd.f32 %v67, %v168
    %170 = vmatmul.f32.gmra.mxu0 %v90
    %v171 = vpop.f32.mrf.mxu0
    %v172 = vadd.f32 %v67, %v171
    %173 = vmatmul.f32.gmra.mxu0 %v93
    %v174 = vpop.f32.mrf.mxu0
    %v175 = vadd.f32 %v67, %v174
    %176 = vdwg.mxu0
    %177 = vst [vmem:[#allocation2] sm:$0xff] %v113
    %vm178 = vcmask 261120
    %179 = vst.msk [vmem:[#allocation2 + $0x8] sm:$0xff] %vm178, %v154
    %180 = vst [vmem:[#allocation2 + $0x10] sm:$0xff] %v116
    %181 = vst.msk [vmem:[#allocation2 + $0x18] sm:$0xff] %vm178, %v157
    %182 = vst [vmem:[#allocation2 + $0x20] sm:$0xff] %v119
    %183 = vst.msk [vmem:[#allocation2 + $0x28] sm:$0xff] %vm178, %v160
    %184 = vst [vmem:[#allocation2 + $0x30] sm:$0xff] %v122
    %185 = vst.msk [vmem:[#allocation2 + $0x38] sm:$0xff] %vm178, %v163
    %186 = vst [vmem:[#allocation2 + $0x40] sm:$0xff] %v125
    %187 = vst.msk [vmem:[#allocation2 + $0x48] sm:$0xff] %vm178, %v166
    %188 = vst [vmem:[#allocation2 + $0x50] sm:$0xff] %v128
    %189 = vst.msk [vmem:[#allocation2 + $0x58] sm:$0xff] %vm178, %v169
    %190 = vst [vmem:[#allocation2 + $0x60] sm:$0xff] %v131
    %191 = vst.msk [vmem:[#allocation2 + $0x68] sm:$0xff] %vm178, %v172
    %192 = vst [vmem:[#allocation2 + $0x70] sm:$0xff] %v134
    %193 = vst.msk [vmem:[#allocation2 + $0x78] sm:$0xff] %vm178, %v175
    %v194 = vld [vmem:[%s6] sm:$0xff]
    %v195 = vld [vmem:[%s6 + $0x8] sm:$0xff]
    %v196 = vld [vmem:[%s6 + $0x10] sm:$0xff]
    %v197 = vld [vmem:[%s6 + $0x18] sm:$0xff]
    %v198 = vld [vmem:[%s6 + $0x20] sm:$0xff]
    %v199 = vld [vmem:[%s6 + $0x28] sm:$0xff]
    %v200 = vld [vmem:[%s6 + $0x30] sm:$0xff]
    %v201 = vld [vmem:[%s6 + $0x38] sm:$0xff]
    %v202 = vld [vmem:[%s6 + $0x40] sm:$0xff]
    %v203 = vld [vmem:[%s6 + $0x48] sm:$0xff]
    %v204 = vld [vmem:[%s6 + $0x50] sm:$0xff]
    %v205 = vld [vmem:[%s6 + $0x58] sm:$0xff]
    %v206 = vld [vmem:[%s6 + $0x60] sm:$0xff]
    %v207 = vld [vmem:[%s6 + $0x68] sm:$0xff]
    %v208 = vld [vmem:[%s6 + $0x70] sm:$0xff]
    %v209 = vld [vmem:[%s6 + $0x78] sm:$0xff]
    %v210 = vld [vmem:[#allocation2] sm:$0xff]
    %v211 = vld [vmem:[#allocation2 + $0x8] sm:$0xff]
    %vm212 = vcmask 523264
    %v214 = vsel %vm212, 0.0, 0
    %216 = vmatpush.msra.mxu0 0.0
    %217 = vmatpush.msra.mxu0 0.0
    %218 = vmatpush.msra.mxu0 0.0
    %219 = vmatpush.msra.mxu0 0.0
    %220 = vmatpush.msra.mxu0 0.0
    %221 = vmatpush.msra.mxu0 0.0
    %222 = vmatpush.msra.mxu0 0.0
    %223 = vmatpush.msra.mxu0 0.0
    %224 = vmatpush.msra.mxu0 %v208
    %225 = vmatpush.msra.mxu0 %v206
    %226 = vmatpush.msra.mxu0 %v204
    %227 = vmatpush.msra.mxu0 %v202
    %228 = vmatpush.msra.mxu0 %v200
    %229 = vmatpush.msra.mxu0 %v198
    %230 = vmatpush.msra.mxu0 %v196
    %231 = vmatpush.msra.mxu0 %v194
    %232 = vmatmul.f32.gmra.mxu0 %v214
    %v233 = vpop.f32.mrf.mxu0
    %v234 = vadd.f32 0.0, %v233
    %235 = vdwg.mxu0
    %236 = vmatpush.msra.mxu0 0.0
    %237 = vmatpush.msra.mxu0 0.0
    %238 = vmatpush.msra.mxu0 0.0
    %239 = vmatpush.msra.mxu0 0.0
    %240 = vmatpush.msra.mxu0 0.0
    %241 = vmatpush.msra.mxu0 0.0
    %242 = vmatpush.msra.mxu0 0.0
    %243 = vmatpush.msra.mxu0 0.0
    %244 = vmatpush.msra.mxu0 %v209
    %245 = vmatpush.msra.mxu0 %v207
    %246 = vmatpush.msra.mxu0 %v205
    %247 = vmatpush.msra.mxu0 %v203
    %248 = vmatpush.msra.mxu0 %v201
    %249 = vmatpush.msra.mxu0 %v199
    %250 = vmatpush.msra.mxu0 %v197
    %251 = vmatpush.msra.mxu0 %v195
    %252 = vmatmul.f32.gmra.mxu0 %v214
    %v253 = vpop.f32.mrf.mxu0
    %v254 = vadd.f32 0.0, %v253
    %255 = vdwg.mxu0
    %v256 = vadd.f32 %v210, %v234
    %v257 = vadd.f32 %v211, %v254
    %v258 = vxor.u32 %v256, 2147483648
    %v259 = vmul.f32 %v258, 1.442695
    %v260 = vpow.pop %v259
    %v261 = vadd.f32 %v260, 1.0
    %v262 = vrcp.pop %v261
    %v263 = vmul.f32 %v261, %v262
    %v264 = vsub.f32 1.0, %v263
    %v265 = vmul.f32 %v262, %v264
    %v266 = vadd.f32 %v262, %v265
    %vm267 = vweird.f32 %v261
    %vm268 = vweird.f32 %v262
    %vm269 = vmor %vm267, %vm268
    %v270 = vsel %vm269, %v262, %v266
    %v271 = vand.u32 2147483647, %v261
    %vm272 = vcmp.eq.f32.partialorder %v271, 8.507059e+37
    %v273 = vand.u32 %v261, 2147483648
    %v274 = vor.u32 1.1754944e-38, %v273
    %v275 = vsel %vm272, %v274, %v270
    %v276 = vmul.f32 1.0, %v275
    %v277 = vtanh.pop %v256
    %v278 = vtanh.pop %v257
    %v279 = vsub.f32 0.0, %v278
    %v280 = vld [vmem:[%s1] sm:$0xff]
    %282 = vset.pattern.permute.xlu0 0
    %283 = vperm.xlu0 %282, %v280
    %v284 = vpop.permute.xlu0 %283
    %v286 = vmul.f32 %v278, %v284
    %v287 = vadd.f32 %v279, %v286
    %v288 = vmul.f32 %v276, %v287
    %290 = vrot.lane.b32.xlu0 %v277, 64
    %v291 = vpop.permute.xlu0 %290
    %v293 = vmul.f32 %v276, %v291
    %295 = vrot.lane.b32.xlu0 %v293, 96
    %v296 = vpop.permute.xlu0 %295
    %v298 = vadd.f32 %v288, %v296
    %v299 = vtanh.pop %v298
    %301 = vrot.lane.b32.xlu0 %v299, 64
    %v302 = vpop.permute.xlu0 %301
    %v304 = vmul.f32 %v276, %v302
    %306 = vrot.lane.b32.xlu0 %v304, 64
    %v307 = vpop.permute.xlu0 %306
    %309 = vst.msk [vmem:[#allocation3] sm:$0xff] %vm178, %v307
    %311 = vrot.lane.b32.xlu0 %v298, 32
    %v312 = vpop.permute.xlu0 %311
    %v314 = vsel %vm178, %v307, %v312
    %s315 = scalar_lea.vmem [#allocation2], 16
    %v316 = vld [vmem:[%s315] sm:$0xff]
    %v317 = vld [vmem:[%s315 + $0x8] sm:$0xff]
    %v319 = vsel %vm212, %v314, 0
    %321 = vmatpush.msra.mxu0 0.0
    %322 = vmatpush.msra.mxu0 0.0
    %323 = vmatpush.msra.mxu0 0.0
    %324 = vmatpush.msra.mxu0 0.0
    %325 = vmatpush.msra.mxu0 0.0
    %326 = vmatpush.msra.mxu0 0.0
    %327 = vmatpush.msra.mxu0 0.0
    %328 = vmatpush.msra.mxu0 0.0
    %329 = vmatpush.msra.mxu0 %v208
    %330 = vmatpush.msra.mxu0 %v206
    %331 = vmatpush.msra.mxu0 %v204
    %332 = vmatpush.msra.mxu0 %v202
    %333 = vmatpush.msra.mxu0 %v200
    %334 = vmatpush.msra.mxu0 %v198
    %335 = vmatpush.msra.mxu0 %v196
    %336 = vmatpush.msra.mxu0 %v194
    %337 = vmatmul.f32.gmra.mxu0 %v319
    %v338 = vpop.f32.mrf.mxu0
    %v339 = vadd.f32 0.0, %v338
    %340 = vdwg.mxu0
    %341 = vmatpush.msra.mxu0 0.0
    %342 = vmatpush.msra.mxu0 0.0
    %343 = vmatpush.msra.mxu0 0.0
    %344 = vmatpush.msra.mxu0 0.0
    %345 = vmatpush.msra.mxu0 0.0
    %346 = vmatpush.msra.mxu0 0.0
    %347 = vmatpush.msra.mxu0 0.0
    %348 = vmatpush.msra.mxu0 0.0
    %349 = vmatpush.msra.mxu0 %v209
    %350 = vmatpush.msra.mxu0 %v207
    %351 = vmatpush.msra.mxu0 %v205
    %352 = vmatpush.msra.mxu0 %v203
    %353 = vmatpush.msra.mxu0 %v201
    %354 = vmatpush.msra.mxu0 %v199
    %355 = vmatpush.msra.mxu0 %v197
    %356 = vmatpush.msra.mxu0 %v195
    %357 = vmatmul.f32.gmra.mxu0 %v319
    %v358 = vpop.f32.mrf.mxu0
    %v359 = vadd.f32 0.0, %v358
    %360 = vdwg.mxu0
    %v361 = vadd.f32 %v316, %v339
    %v362 = vadd.f32 %v317, %v359
    %v363 = vxor.u32 %v361, 2147483648
    %v364 = vmul.f32 %v363, 1.442695
    %v365 = vpow.pop %v364
    %v366 = vadd.f32 %v365, 1.0
    %v367 = vrcp.pop %v366
    %v368 = vmul.f32 %v366, %v367
    %v369 = vsub.f32 1.0, %v368
    %v370 = vmul.f32 %v367, %v369
    %v371 = vadd.f32 %v367, %v370
    %vm372 = vweird.f32 %v366
    %vm373 = vweird.f32 %v367
    %vm374 = vmor %vm372, %vm373
    %v375 = vsel %vm374, %v367, %v371
    %v376 = vand.u32 2147483647, %v366
    %vm377 = vcmp.eq.f32.partialorder %v376, 8.507059e+37
    %v378 = vand.u32 %v366, 2147483648
    %v379 = vor.u32 1.1754944e-38, %v378
    %v380 = vsel %vm377, %v379, %v375
    %v381 = vmul.f32 1.0, %v380
    %v382 = vtanh.pop %v361
    %v383 = vtanh.pop %v362
    %v384 = vsub.f32 %v298, %v383
    %s385 = scalar_lea.vmem %s1, 8
    %v386 = vld [vmem:[%s385] sm:$0xff]
    %388 = vset.pattern.permute.xlu0 0
    %389 = vperm.xlu0 %388, %v386
    %v390 = vpop.permute.xlu0 %389
    %v392 = vmul.f32 %v383, %v390
    %v393 = vadd.f32 %v384, %v392
    %v394 = vmul.f32 %v381, %v393
    %396 = vrot.lane.b32.xlu0 %v382, 64
    %v397 = vpop.permute.xlu0 %396
    %v399 = vmul.f32 %v381, %v397
    %401 = vrot.lane.b32.xlu0 %v399, 96
    %v402 = vpop.permute.xlu0 %401
    %v404 = vadd.f32 %v394, %v402
    %v405 = vtanh.pop %v404
    %407 = vrot.lane.b32.xlu0 %v405, 64
    %v408 = vpop.permute.xlu0 %407
    %v410 = vmul.f32 %v381, %v408
    %412 = vrot.lane.b32.xlu0 %v410, 64
    %v413 = vpop.permute.xlu0 %412
    %s415 = scalar_lea.vmem [#allocation3], 8
    %416 = vst.msk [vmem:[%s415] sm:$0xff] %vm178, %v413
    %418 = vrot.lane.b32.xlu0 %v404, 32
    %v419 = vpop.permute.xlu0 %418
    %v421 = vsel %vm178, %v413, %v419
    %s422 = scalar_lea.vmem [#allocation2], 32
    %v423 = vld [vmem:[%s422] sm:$0xff]
    %v424 = vld [vmem:[%s422 + $0x8] sm:$0xff]
    %v426 = vsel %vm212, %v421, 0
    %428 = vmatpush.msra.mxu0 0.0
    %429 = vmatpush.msra.mxu0 0.0
    %430 = vmatpush.msra.mxu0 0.0
    %431 = vmatpush.msra.mxu0 0.0
    %432 = vmatpush.msra.mxu0 0.0
    %433 = vmatpush.msra.mxu0 0.0
    %434 = vmatpush.msra.mxu0 0.0
    %435 = vmatpush.msra.mxu0 0.0
    %436 = vmatpush.msra.mxu0 %v208
    %437 = vmatpush.msra.mxu0 %v206
    %438 = vmatpush.msra.mxu0 %v204
    %439 = vmatpush.msra.mxu0 %v202
    %440 = vmatpush.msra.mxu0 %v200
    %441 = vmatpush.msra.mxu0 %v198
    %442 = vmatpush.msra.mxu0 %v196
    %443 = vmatpush.msra.mxu0 %v194
    %444 = vmatmul.f32.gmra.mxu0 %v426
    %v445 = vpop.f32.mrf.mxu0
    %v446 = vadd.f32 0.0, %v445
    %447 = vdwg.mxu0
    %448 = vmatpush.msra.mxu0 0.0
    %449 = vmatpush.msra.mxu0 0.0
    %450 = vmatpush.msra.mxu0 0.0
    %451 = vmatpush.msra.mxu0 0.0
    %452 = vmatpush.msra.mxu0 0.0
    %453 = vmatpush.msra.mxu0 0.0
    %454 = vmatpush.msra.mxu0 0.0
    %455 = vmatpush.msra.mxu0 0.0
    %456 = vmatpush.msra.mxu0 %v209
    %457 = vmatpush.msra.mxu0 %v207
    %458 = vmatpush.msra.mxu0 %v205
    %459 = vmatpush.msra.mxu0 %v203
    %460 = vmatpush.msra.mxu0 %v201
    %461 = vmatpush.msra.mxu0 %v199
    %462 = vmatpush.msra.mxu0 %v197
    %463 = vmatpush.msra.mxu0 %v195
    %464 = vmatmul.f32.gmra.mxu0 %v426
    %v465 = vpop.f32.mrf.mxu0
    %v466 = vadd.f32 0.0, %v465
    %467 = vdwg.mxu0
    %v468 = vadd.f32 %v423, %v446
    %v469 = vadd.f32 %v424, %v466
    %v470 = vxor.u32 %v468, 2147483648
    %v471 = vmul.f32 %v470, 1.442695
    %v472 = vpow.pop %v471
    %v473 = vadd.f32 %v472, 1.0
    %v474 = vrcp.pop %v473
    %v475 = vmul.f32 %v473, %v474
    %v476 = vsub.f32 1.0, %v475
    %v477 = vmul.f32 %v474, %v476
    %v478 = vadd.f32 %v474, %v477
    %vm479 = vweird.f32 %v473
    %vm480 = vweird.f32 %v474
    %vm481 = vmor %vm479, %vm480
    %v482 = vsel %vm481, %v474, %v478
    %v483 = vand.u32 2147483647, %v473
    %vm484 = vcmp.eq.f32.partialorder %v483, 8.507059e+37
    %v485 = vand.u32 %v473, 2147483648
    %v486 = vor.u32 1.1754944e-38, %v485
    %v487 = vsel %vm484, %v486, %v482
    %v488 = vmul.f32 1.0, %v487
    %v489 = vtanh.pop %v468
    %v490 = vtanh.pop %v469
    %v491 = vsub.f32 %v404, %v490
    %s492 = scalar_lea.vmem %s1, 16
    %v493 = vld [vmem:[%s492] sm:$0xff]
    %495 = vset.pattern.permute.xlu0 0
    %496 = vperm.xlu0 %495, %v493
    %v497 = vpop.permute.xlu0 %496
    %v499 = vmul.f32 %v490, %v497
    %v500 = vadd.f32 %v491, %v499
    %v501 = vmul.f32 %v488, %v500
    %503 = vrot.lane.b32.xlu0 %v489, 64
    %v504 = vpop.permute.xlu0 %503
    %v506 = vmul.f32 %v488, %v504
    %508 = vrot.lane.b32.xlu0 %v506, 96
    %v509 = vpop.permute.xlu0 %508
    %v511 = vadd.f32 %v501, %v509
    %v512 = vtanh.pop %v511
    %514 = vrot.lane.b32.xlu0 %v512, 64
    %v515 = vpop.permute.xlu0 %514
    %v517 = vmul.f32 %v488, %v515
    %519 = vrot.lane.b32.xlu0 %v517, 64
    %v520 = vpop.permute.xlu0 %519
    %s522 = scalar_lea.vmem [#allocation3], 16
    %523 = vst.msk [vmem:[%s522] sm:$0xff] %vm178, %v520
    %525 = vrot.lane.b32.xlu0 %v511, 32
    %v526 = vpop.permute.xlu0 %525
    %v528 = vsel %vm178, %v520, %v526
    %s529 = scalar_lea.vmem [#allocation2], 48
    %v530 = vld [vmem:[%s529] sm:$0xff]
    %v531 = vld [vmem:[%s529 + $0x8] sm:$0xff]
    %v533 = vsel %vm212, %v528, 0
    %535 = vmatpush.msra.mxu0 0.0
    %536 = vmatpush.msra.mxu0 0.0
    %537 = vmatpush.msra.mxu0 0.0
    %538 = vmatpush.msra.mxu0 0.0
    %539 = vmatpush.msra.mxu0 0.0
    %540 = vmatpush.msra.mxu0 0.0
    %541 = vmatpush.msra.mxu0 0.0
    %542 = vmatpush.msra.mxu0 0.0
    %543 = vmatpush.msra.mxu0 %v208
    %544 = vmatpush.msra.mxu0 %v206
    %545 = vmatpush.msra.mxu0 %v204
    %546 = vmatpush.msra.mxu0 %v202
    %547 = vmatpush.msra.mxu0 %v200
    %548 = vmatpush.msra.mxu0 %v198
    %549 = vmatpush.msra.mxu0 %v196
    %550 = vmatpush.msra.mxu0 %v194
    %551 = vmatmul.f32.gmra.mxu0 %v533
    %v552 = vpop.f32.mrf.mxu0
    %v553 = vadd.f32 0.0, %v552
    %554 = vdwg.mxu0
    %555 = vmatpush.msra.mxu0 0.0
    %556 = vmatpush.msra.mxu0 0.0
    %557 = vmatpush.msra.mxu0 0.0
    %558 = vmatpush.msra.mxu0 0.0
    %559 = vmatpush.msra.mxu0 0.0
    %560 = vmatpush.msra.mxu0 0.0
    %561 = vmatpush.msra.mxu0 0.0
    %562 = vmatpush.msra.mxu0 0.0
    %563 = vmatpush.msra.mxu0 %v209
    %564 = vmatpush.msra.mxu0 %v207
    %565 = vmatpush.msra.mxu0 %v205
    %566 = vmatpush.msra.mxu0 %v203
    %567 = vmatpush.msra.mxu0 %v201
    %568 = vmatpush.msra.mxu0 %v199
    %569 = vmatpush.msra.mxu0 %v197
    %570 = vmatpush.msra.mxu0 %v195
    %571 = vmatmul.f32.gmra.mxu0 %v533
    %v572 = vpop.f32.mrf.mxu0
    %v573 = vadd.f32 0.0, %v572
    %574 = vdwg.mxu0
    %v575 = vadd.f32 %v530, %v553
    %v576 = vadd.f32 %v531, %v573
    %v577 = vxor.u32 %v575, 2147483648
    %v578 = vmul.f32 %v577, 1.442695
    %v579 = vpow.pop %v578
    %v580 = vadd.f32 %v579, 1.0
    %v581 = vrcp.pop %v580
    %v582 = vmul.f32 %v580, %v581
    %v583 = vsub.f32 1.0, %v582
    %v584 = vmul.f32 %v581, %v583
    %v585 = vadd.f32 %v581, %v584
    %vm586 = vweird.f32 %v580
    %vm587 = vweird.f32 %v581
    %vm588 = vmor %vm586, %vm587
    %v589 = vsel %vm588, %v581, %v585
    %v590 = vand.u32 2147483647, %v580
    %vm591 = vcmp.eq.f32.partialorder %v590, 8.507059e+37
    %v592 = vand.u32 %v580, 2147483648
    %v593 = vor.u32 1.1754944e-38, %v592
    %v594 = vsel %vm591, %v593, %v589
    %v595 = vmul.f32 1.0, %v594
    %v596 = vtanh.pop %v575
    %v597 = vtanh.pop %v576
    %v598 = vsub.f32 %v511, %v597
    %s599 = scalar_lea.vmem %s1, 24
    %v600 = vld [vmem:[%s599] sm:$0xff]
    %602 = vset.pattern.permute.xlu0 0
    %603 = vperm.xlu0 %602, %v600
    %v604 = vpop.permute.xlu0 %603
    %v606 = vmul.f32 %v597, %v604
    %v607 = vadd.f32 %v598, %v606
    %v608 = vmul.f32 %v595, %v607
    %610 = vrot.lane.b32.xlu0 %v596, 64
    %v611 = vpop.permute.xlu0 %610
    %v613 = vmul.f32 %v595, %v611
    %615 = vrot.lane.b32.xlu0 %v613, 96
    %v616 = vpop.permute.xlu0 %615
    %v618 = vadd.f32 %v608, %v616
    %v619 = vtanh.pop %v618
    %621 = vrot.lane.b32.xlu0 %v619, 64
    %v622 = vpop.permute.xlu0 %621
    %v624 = vmul.f32 %v595, %v622
    %626 = vrot.lane.b32.xlu0 %v624, 64
    %v627 = vpop.permute.xlu0 %626
    %s629 = scalar_lea.vmem [#allocation3], 24
    %630 = vst.msk [vmem:[%s629] sm:$0xff] %vm178, %v627
    %632 = vrot.lane.b32.xlu0 %v618, 32
    %v633 = vpop.permute.xlu0 %632
    %v635 = vsel %vm178, %v627, %v633
    %s636 = scalar_lea.vmem [#allocation2], 64
    %v637 = vld [vmem:[%s636] sm:$0xff]
    %v638 = vld [vmem:[%s636 + $0x8] sm:$0xff]
    %v640 = vsel %vm212, %v635, 0
    %642 = vmatpush.msra.mxu0 0.0
    %643 = vmatpush.msra.mxu0 0.0
    %644 = vmatpush.msra.mxu0 0.0
    %645 = vmatpush.msra.mxu0 0.0
    %646 = vmatpush.msra.mxu0 0.0
    %647 = vmatpush.msra.mxu0 0.0
    %648 = vmatpush.msra.mxu0 0.0
    %649 = vmatpush.msra.mxu0 0.0
    %650 = vmatpush.msra.mxu0 %v208
    %651 = vmatpush.msra.mxu0 %v206
    %652 = vmatpush.msra.mxu0 %v204
    %653 = vmatpush.msra.mxu0 %v202
    %654 = vmatpush.msra.mxu0 %v200
    %655 = vmatpush.msra.mxu0 %v198
    %656 = vmatpush.msra.mxu0 %v196
    %657 = vmatpush.msra.mxu0 %v194
    %658 = vmatmul.f32.gmra.mxu0 %v640
    %v659 = vpop.f32.mrf.mxu0
    %v660 = vadd.f32 0.0, %v659
    %661 = vdwg.mxu0
    %662 = vmatpush.msra.mxu0 0.0
    %663 = vmatpush.msra.mxu0 0.0
    %664 = vmatpush.msra.mxu0 0.0
    %665 = vmatpush.msra.mxu0 0.0
    %666 = vmatpush.msra.mxu0 0.0
    %667 = vmatpush.msra.mxu0 0.0
    %668 = vmatpush.msra.mxu0 0.0
    %669 = vmatpush.msra.mxu0 0.0
    %670 = vmatpush.msra.mxu0 %v209
    %671 = vmatpush.msra.mxu0 %v207
    %672 = vmatpush.msra.mxu0 %v205
    %673 = vmatpush.msra.mxu0 %v203
    %674 = vmatpush.msra.mxu0 %v201
    %675 = vmatpush.msra.mxu0 %v199
    %676 = vmatpush.msra.mxu0 %v197
    %677 = vmatpush.msra.mxu0 %v195
    %678 = vmatmul.f32.gmra.mxu0 %v640
    %v679 = vpop.f32.mrf.mxu0
    %v680 = vadd.f32 0.0, %v679
    %681 = vdwg.mxu0
    %v682 = vadd.f32 %v637, %v660
    %v683 = vadd.f32 %v638, %v680
    %v684 = vxor.u32 %v682, 2147483648
    %v685 = vmul.f32 %v684, 1.442695
    %v686 = vpow.pop %v685
    %v687 = vadd.f32 %v686, 1.0
    %v688 = vrcp.pop %v687
    %v689 = vmul.f32 %v687, %v688
    %v690 = vsub.f32 1.0, %v689
    %v691 = vmul.f32 %v688, %v690
    %v692 = vadd.f32 %v688, %v691
    %vm693 = vweird.f32 %v687
    %vm694 = vweird.f32 %v688
    %vm695 = vmor %vm693, %vm694
    %v696 = vsel %vm695, %v688, %v692
    %v697 = vand.u32 2147483647, %v687
    %vm698 = vcmp.eq.f32.partialorder %v697, 8.507059e+37
    %v699 = vand.u32 %v687, 2147483648
    %v700 = vor.u32 1.1754944e-38, %v699
    %v701 = vsel %vm698, %v700, %v696
    %v702 = vmul.f32 1.0, %v701
    %v703 = vtanh.pop %v682
    %v704 = vtanh.pop %v683
    %v705 = vsub.f32 %v618, %v704
    %s706 = scalar_lea.vmem %s1, 32
    %v707 = vld [vmem:[%s706] sm:$0xff]
    %709 = vset.pattern.permute.xlu0 0
    %710 = vperm.xlu0 %709, %v707
    %v711 = vpop.permute.xlu0 %710
    %v713 = vmul.f32 %v704, %v711
    %v714 = vadd.f32 %v705, %v713
    %v715 = vmul.f32 %v702, %v714
    %717 = vrot.lane.b32.xlu0 %v703, 64
    %v718 = vpop.permute.xlu0 %717
    %v720 = vmul.f32 %v702, %v718
    %722 = vrot.lane.b32.xlu0 %v720, 96
    %v723 = vpop.permute.xlu0 %722
    %v725 = vadd.f32 %v715, %v723
    %v726 = vtanh.pop %v725
    %728 = vrot.lane.b32.xlu0 %v726, 64
    %v729 = vpop.permute.xlu0 %728
    %v731 = vmul.f32 %v702, %v729
    %733 = vrot.lane.b32.xlu0 %v731, 64
    %v734 = vpop.permute.xlu0 %733
    %s736 = scalar_lea.vmem [#allocation3], 32
    %737 = vst.msk [vmem:[%s736] sm:$0xff] %vm178, %v734
    %739 = vrot.lane.b32.xlu0 %v725, 32
    %v740 = vpop.permute.xlu0 %739
    %v742 = vsel %vm178, %v734, %v740
    %s743 = scalar_lea.vmem [#allocation2], 80
    %v744 = vld [vmem:[%s743] sm:$0xff]
    %v745 = vld [vmem:[%s743 + $0x8] sm:$0xff]
    %v747 = vsel %vm212, %v742, 0
    %749 = vmatpush.msra.mxu0 0.0
    %750 = vmatpush.msra.mxu0 0.0
    %751 = vmatpush.msra.mxu0 0.0
    %752 = vmatpush.msra.mxu0 0.0
    %753 = vmatpush.msra.mxu0 0.0
    %754 = vmatpush.msra.mxu0 0.0
    %755 = vmatpush.msra.mxu0 0.0
    %756 = vmatpush.msra.mxu0 0.0
    %757 = vmatpush.msra.mxu0 %v208
    %758 = vmatpush.msra.mxu0 %v206
    %759 = vmatpush.msra.mxu0 %v204
    %760 = vmatpush.msra.mxu0 %v202
    %761 = vmatpush.msra.mxu0 %v200
    %762 = vmatpush.msra.mxu0 %v198
    %763 = vmatpush.msra.mxu0 %v196
    %764 = vmatpush.msra.mxu0 %v194
    %765 = vmatmul.f32.gmra.mxu0 %v747
    %v766 = vpop.f32.mrf.mxu0
    %v767 = vadd.f32 0.0, %v766
    %768 = vdwg.mxu0
    %769 = vmatpush.msra.mxu0 0.0
    %770 = vmatpush.msra.mxu0 0.0
    %771 = vmatpush.msra.mxu0 0.0
    %772 = vmatpush.msra.mxu0 0.0
    %773 = vmatpush.msra.mxu0 0.0
    %774 = vmatpush.msra.mxu0 0.0
    %775 = vmatpush.msra.mxu0 0.0
    %776 = vmatpush.msra.mxu0 0.0
    %777 = vmatpush.msra.mxu0 %v209
    %778 = vmatpush.msra.mxu0 %v207
    %779 = vmatpush.msra.mxu0 %v205
    %780 = vmatpush.msra.mxu0 %v203
    %781 = vmatpush.msra.mxu0 %v201
    %782 = vmatpush.msra.mxu0 %v199
    %783 = vmatpush.msra.mxu0 %v197
    %784 = vmatpush.msra.mxu0 %v195
    %785 = vmatmul.f32.gmra.mxu0 %v747
    %v786 = vpop.f32.mrf.mxu0
    %v787 = vadd.f32 0.0, %v786
    %788 = vdwg.mxu0
    %v789 = vadd.f32 %v744, %v767
    %v790 = vadd.f32 %v745, %v787
    %v791 = vxor.u32 %v789, 2147483648
    %v792 = vmul.f32 %v791, 1.442695
    %v793 = vpow.pop %v792
    %v794 = vadd.f32 %v793, 1.0
    %v795 = vrcp.pop %v794
    %v796 = vmul.f32 %v794, %v795
    %v797 = vsub.f32 1.0, %v796
    %v798 = vmul.f32 %v795, %v797
    %v799 = vadd.f32 %v795, %v798
    %vm800 = vweird.f32 %v794
    %vm801 = vweird.f32 %v795
    %vm802 = vmor %vm800, %vm801
    %v803 = vsel %vm802, %v795, %v799
    %v804 = vand.u32 2147483647, %v794
    %vm805 = vcmp.eq.f32.partialorder %v804, 8.507059e+37
    %v806 = vand.u32 %v794, 2147483648
    %v807 = vor.u32 1.1754944e-38, %v806
    %v808 = vsel %vm805, %v807, %v803
    %v809 = vmul.f32 1.0, %v808
    %v810 = vtanh.pop %v789
    %v811 = vtanh.pop %v790
    %v812 = vsub.f32 %v725, %v811
    %s813 = scalar_lea.vmem %s1, 40
    %v814 = vld [vmem:[%s813] sm:$0xff]
    %816 = vset.pattern.permute.xlu0 0
    %817 = vperm.xlu0 %816, %v814
    %v818 = vpop.permute.xlu0 %817
    %v820 = vmul.f32 %v811, %v818
    %v821 = vadd.f32 %v812, %v820
    %v822 = vmul.f32 %v809, %v821
    %824 = vrot.lane.b32.xlu0 %v810, 64
    %v825 = vpop.permute.xlu0 %824
    %v827 = vmul.f32 %v809, %v825
    %829 = vrot.lane.b32.xlu0 %v827, 96
    %v830 = vpop.permute.xlu0 %829
    %v832 = vadd.f32 %v822, %v830
    %v833 = vtanh.pop %v832
    %835 = vrot.lane.b32.xlu0 %v833, 64
    %v836 = vpop.permute.xlu0 %835
    %v838 = vmul.f32 %v809, %v836
    %840 = vrot.lane.b32.xlu0 %v838, 64
    %v841 = vpop.permute.xlu0 %840
    %s843 = scalar_lea.vmem [#allocation3], 40
    %844 = vst.msk [vmem:[%s843] sm:$0xff] %vm178, %v841
    %846 = vrot.lane.b32.xlu0 %v832, 32
    %v847 = vpop.permute.xlu0 %846
    %v849 = vsel %vm178, %v841, %v847
    %s850 = scalar_lea.vmem [#allocation2], 96
    %v851 = vld [vmem:[%s850] sm:$0xff]
    %v852 = vld [vmem:[%s850 + $0x8] sm:$0xff]
    %v854 = vsel %vm212, %v849, 0
    %856 = vmatpush.msra.mxu0 0.0
    %857 = vmatpush.msra.mxu0 0.0
    %858 = vmatpush.msra.mxu0 0.0
    %859 = vmatpush.msra.mxu0 0.0
    %860 = vmatpush.msra.mxu0 0.0
    %861 = vmatpush.msra.mxu0 0.0
    %862 = vmatpush.msra.mxu0 0.0
    %863 = vmatpush.msra.mxu0 0.0
    %864 = vmatpush.msra.mxu0 %v208
    %865 = vmatpush.msra.mxu0 %v206
    %866 = vmatpush.msra.mxu0 %v204
    %867 = vmatpush.msra.mxu0 %v202
    %868 = vmatpush.msra.mxu0 %v200
    %869 = vmatpush.msra.mxu0 %v198
    %870 = vmatpush.msra.mxu0 %v196
    %871 = vmatpush.msra.mxu0 %v194
    %872 = vmatmul.f32.gmra.mxu0 %v854
    %v873 = vpop.f32.mrf.mxu0
    %v874 = vadd.f32 0.0, %v873
    %875 = vdwg.mxu0
    %876 = vmatpush.msra.mxu0 0.0
    %877 = vmatpush.msra.mxu0 0.0
    %878 = vmatpush.msra.mxu0 0.0
    %879 = vmatpush.msra.mxu0 0.0
    %880 = vmatpush.msra.mxu0 0.0
    %881 = vmatpush.msra.mxu0 0.0
    %882 = vmatpush.msra.mxu0 0.0
    %883 = vmatpush.msra.mxu0 0.0
    %884 = vmatpush.msra.mxu0 %v209
    %885 = vmatpush.msra.mxu0 %v207
    %886 = vmatpush.msra.mxu0 %v205
    %887 = vmatpush.msra.mxu0 %v203
    %888 = vmatpush.msra.mxu0 %v201
    %889 = vmatpush.msra.mxu0 %v199
    %890 = vmatpush.msra.mxu0 %v197
    %891 = vmatpush.msra.mxu0 %v195
    %892 = vmatmul.f32.gmra.mxu0 %v854
    %v893 = vpop.f32.mrf.mxu0
    %v894 = vadd.f32 0.0, %v893
    %895 = vdwg.mxu0
    %v896 = vadd.f32 %v851, %v874
    %v897 = vadd.f32 %v852, %v894
    %v898 = vxor.u32 %v896, 2147483648
    %v899 = vmul.f32 %v898, 1.442695
    %v900 = vpow.pop %v899
    %v901 = vadd.f32 %v900, 1.0
    %v902 = vrcp.pop %v901
    %v903 = vmul.f32 %v901, %v902
    %v904 = vsub.f32 1.0, %v903
    %v905 = vmul.f32 %v902, %v904
    %v906 = vadd.f32 %v902, %v905
    %vm907 = vweird.f32 %v901
    %vm908 = vweird.f32 %v902
    %vm909 = vmor %vm907, %vm908
    %v910 = vsel %vm909, %v902, %v906
    %v911 = vand.u32 2147483647, %v901
    %vm912 = vcmp.eq.f32.partialorder %v911, 8.507059e+37
    %v913 = vand.u32 %v901, 2147483648
    %v914 = vor.u32 1.1754944e-38, %v913
    %v915 = vsel %vm912, %v914, %v910
    %v916 = vmul.f32 1.0, %v915
    %v917 = vtanh.pop %v896
    %v918 = vtanh.pop %v897
    %v919 = vsub.f32 %v832, %v918
    %s920 = scalar_lea.vmem %s1, 48
    %v921 = vld [vmem:[%s920] sm:$0xff]
    %923 = vset.pattern.permute.xlu0 0
    %924 = vperm.xlu0 %923, %v921
    %v925 = vpop.permute.xlu0 %924
    %v927 = vmul.f32 %v918, %v925
    %v928 = vadd.f32 %v919, %v927
    %v929 = vmul.f32 %v916, %v928
    %931 = vrot.lane.b32.xlu0 %v917, 64
    %v932 = vpop.permute.xlu0 %931
    %v934 = vmul.f32 %v916, %v932
    %936 = vrot.lane.b32.xlu0 %v934, 96
    %v937 = vpop.permute.xlu0 %936
    %v939 = vadd.f32 %v929, %v937
    %v940 = vtanh.pop %v939
    %942 = vrot.lane.b32.xlu0 %v940, 64
    %v943 = vpop.permute.xlu0 %942
    %v945 = vmul.f32 %v916, %v943
    %947 = vrot.lane.b32.xlu0 %v945, 64
    %v948 = vpop.permute.xlu0 %947
    %s950 = scalar_lea.vmem [#allocation3], 48
    %951 = vst.msk [vmem:[%s950] sm:$0xff] %vm178, %v948
    %953 = vrot.lane.b32.xlu0 %v939, 32
    %v954 = vpop.permute.xlu0 %953
    %v956 = vsel %vm178, %v948, %v954
    %s957 = scalar_lea.vmem [#allocation2], 112
    %v958 = vld [vmem:[%s957] sm:$0xff]
    %v959 = vld [vmem:[%s957 + $0x8] sm:$0xff]
    %v961 = vsel %vm212, %v956, 0
    %963 = vmatpush.msra.mxu0 0.0
    %964 = vmatpush.msra.mxu0 0.0
    %965 = vmatpush.msra.mxu0 0.0
    %966 = vmatpush.msra.mxu0 0.0
    %967 = vmatpush.msra.mxu0 0.0
    %968 = vmatpush.msra.mxu0 0.0
    %969 = vmatpush.msra.mxu0 0.0
    %970 = vmatpush.msra.mxu0 0.0
    %971 = vmatpush.msra.mxu0 %v208
    %972 = vmatpush.msra.mxu0 %v206
    %973 = vmatpush.msra.mxu0 %v204
    %974 = vmatpush.msra.mxu0 %v202
    %975 = vmatpush.msra.mxu0 %v200
    %976 = vmatpush.msra.mxu0 %v198
    %977 = vmatpush.msra.mxu0 %v196
    %978 = vmatpush.msra.mxu0 %v194
    %979 = vmatmul.f32.gmra.mxu0 %v961
    %v980 = vpop.f32.mrf.mxu0
    %v981 = vadd.f32 0.0, %v980
    %982 = vdwg.mxu0
    %983 = vmatpush.msra.mxu0 0.0
    %984 = vmatpush.msra.mxu0 0.0
    %985 = vmatpush.msra.mxu0 0.0
    %986 = vmatpush.msra.mxu0 0.0
    %987 = vmatpush.msra.mxu0 0.0
    %988 = vmatpush.msra.mxu0 0.0
    %989 = vmatpush.msra.mxu0 0.0
    %990 = vmatpush.msra.mxu0 0.0
    %991 = vmatpush.msra.mxu0 %v209
    %992 = vmatpush.msra.mxu0 %v207
    %993 = vmatpush.msra.mxu0 %v205
    %994 = vmatpush.msra.mxu0 %v203
    %995 = vmatpush.msra.mxu0 %v201
    %996 = vmatpush.msra.mxu0 %v199
    %997 = vmatpush.msra.mxu0 %v197
    %998 = vmatpush.msra.mxu0 %v195
    %999 = vmatmul.f32.gmra.mxu0 %v961
    %v1000 = vpop.f32.mrf.mxu0
    %v1001 = vadd.f32 0.0, %v1000
    %1002 = vdwg.mxu0
    %v1003 = vadd.f32 %v958, %v981
    %v1004 = vadd.f32 %v959, %v1001
    %v1005 = vxor.u32 %v1003, 2147483648
    %v1006 = vmul.f32 %v1005, 1.442695
    %v1007 = vpow.pop %v1006
    %v1008 = vadd.f32 %v1007, 1.0
    %v1009 = vrcp.pop %v1008
    %v1010 = vmul.f32 %v1008, %v1009
    %v1011 = vsub.f32 1.0, %v1010
    %v1012 = vmul.f32 %v1009, %v1011
    %v1013 = vadd.f32 %v1009, %v1012
    %vm1014 = vweird.f32 %v1008
    %vm1015 = vweird.f32 %v1009
    %vm1016 = vmor %vm1014, %vm1015
    %v1017 = vsel %vm1016, %v1009, %v1013
    %v1018 = vand.u32 2147483647, %v1008
    %vm1019 = vcmp.eq.f32.partialorder %v1018, 8.507059e+37
    %v1020 = vand.u32 %v1008, 2147483648
    %v1021 = vor.u32 1.1754944e-38, %v1020
    %v1022 = vsel %vm1019, %v1021, %v1017
    %v1023 = vmul.f32 1.0, %v1022
    %v1024 = vtanh.pop %v1003
    %v1025 = vtanh.pop %v1004
    %v1026 = vsub.f32 %v939, %v1025
    %s1027 = scalar_lea.vmem %s1, 56
    %v1028 = vld [vmem:[%s1027] sm:$0xff]
    %1030 = vset.pattern.permute.xlu0 0
    %1031 = vperm.xlu0 %1030, %v1028
    %v1032 = vpop.permute.xlu0 %1031
    %v1034 = vmul.f32 %v1025, %v1032
    %v1035 = vadd.f32 %v1026, %v1034
    %v1036 = vmul.f32 %v1023, %v1035
    %1038 = vrot.lane.b32.xlu0 %v1024, 64
    %v1039 = vpop.permute.xlu0 %1038
    %v1041 = vmul.f32 %v1023, %v1039
    %1043 = vrot.lane.b32.xlu0 %v1041, 96
    %v1044 = vpop.permute.xlu0 %1043
    %v1046 = vadd.f32 %v1036, %v1044
    %v1047 = vtanh.pop %v1046
    %1049 = vrot.lane.b32.xlu0 %v1047, 64
    %v1050 = vpop.permute.xlu0 %1049
    %v1052 = vmul.f32 %v1023, %v1050
    %1054 = vrot.lane.b32.xlu0 %v1052, 64
    %v1055 = vpop.permute.xlu0 %1054
    %s1057 = scalar_lea.vmem [#allocation3], 56
    %1058 = vst.msk [vmem:[%s1057] sm:$0xff] %vm178, %v1055
    %v1059 = vld [vmem:[#allocation3] sm:$0xff]
    %v1060 = vld [vmem:[#allocation3 + $0x8] sm:$0xff]
    %v1061 = vld [vmem:[#allocation3 + $0x10] sm:$0xff]
    %v1062 = vld [vmem:[#allocation3 + $0x18] sm:$0xff]
    %v1063 = vld [vmem:[#allocation3 + $0x20] sm:$0xff]
    %v1064 = vld [vmem:[#allocation3 + $0x28] sm:$0xff]
    %v1065 = vld [vmem:[#allocation3 + $0x30] sm:$0xff]
    %v1066 = vld [vmem:[#allocation3 + $0x38] sm:$0xff]
    %v1067 = vld [vmem:[%s7] sm:$0xff]
    %v1068 = vld [vmem:[%s7 + $0x8] sm:$0xff]
    %v1069 = vld [vmem:[%s7 + $0x10] sm:$0xff]
    %v1070 = vld [vmem:[%s7 + $0x18] sm:$0xff]
    %v1071 = vld [vmem:[#allocation4] sm:$0x1]
    %v1073 = vperm.slane %v1071, 0
    %v1076 = vsel %vm178, %v1059, 0
    %v1079 = vsel %vm178, %v1060, 0
    %v1082 = vsel %vm178, %v1061, 0
    %v1085 = vsel %vm178, %v1062, 0
    %v1088 = vsel %vm178, %v1063, 0
    %v1091 = vsel %vm178, %v1064, 0
    %v1094 = vsel %vm178, %v1065, 0
    %v1097 = vsel %vm178, %v1066, 0
    %1099 = vmatpush.msra.mxu0 0.0
    %1100 = vmatpush.msra.mxu0 0.0
    %1101 = vmatpush.msra.mxu0 0.0
    %1102 = vmatpush.msra.mxu0 0.0
    %1103 = vmatpush.msra.mxu0 0.0
    %1104 = vmatpush.msra.mxu0 0.0
    %1105 = vmatpush.msra.mxu0 0.0
    %1106 = vmatpush.msra.mxu0 0.0
    %1107 = vmatpush.msra.mxu0 0.0
    %1108 = vmatpush.msra.mxu0 0.0
    %1109 = vmatpush.msra.mxu0 0.0
    %1110 = vmatpush.msra.mxu0 0.0
    %1111 = vmatpush.msra.mxu0 %v1070
    %1112 = vmatpush.msra.mxu0 %v1069
    %1113 = vmatpush.msra.mxu0 %v1068
    %1114 = vmatpush.msra.mxu0 %v1067
    %1115 = vmatmul.f32.gmra.mxu0 %v1076
    %v1116 = vpop.f32.mrf.mxu0
    %v1117 = vadd.f32 %v1073, %v1116
    %1118 = vmatmul.f32.gmra.mxu0 %v1079
    %v1119 = vpop.f32.mrf.mxu0
    %v1120 = vadd.f32 %v1073, %v1119
    %1121 = vmatmul.f32.gmra.mxu0 %v1082
    %v1122 = vpop.f32.mrf.mxu0
    %v1123 = vadd.f32 %v1073, %v1122
    %1124 = vmatmul.f32.gmra.mxu0 %v1085
    %v1125 = vpop.f32.mrf.mxu0
    %v1126 = vadd.f32 %v1073, %v1125
    %1127 = vmatmul.f32.gmra.mxu0 %v1088
    %v1128 = vpop.f32.mrf.mxu0
    %v1129 = vadd.f32 %v1073, %v1128
    %1130 = vmatmul.f32.gmra.mxu0 %v1091
    %v1131 = vpop.f32.mrf.mxu0
    %v1132 = vadd.f32 %v1073, %v1131
    %1133 = vmatmul.f32.gmra.mxu0 %v1094
    %v1134 = vpop.f32.mrf.mxu0
    %v1135 = vadd.f32 %v1073, %v1134
    %1136 = vmatmul.f32.gmra.mxu0 %v1097
    %v1137 = vpop.f32.mrf.mxu0
    %v1138 = vadd.f32 %v1073, %v1137
    %1139 = vdwg.mxu0
    %v1140 = vld [vmem:[%s2] sm:$0xff]
    %v1141 = vld [vmem:[%s2 + $0x8] sm:$0xff]
    %v1142 = vld [vmem:[%s2 + $0x10] sm:$0xff]
    %v1143 = vld [vmem:[%s2 + $0x18] sm:$0xff]
    %v1144 = vld [vmem:[%s2 + $0x20] sm:$0xff]
    %v1145 = vld [vmem:[%s2 + $0x28] sm:$0xff]
    %v1146 = vld [vmem:[%s2 + $0x30] sm:$0xff]
    %v1147 = vld [vmem:[%s2 + $0x38] sm:$0xff]
    %v1148 = vmul.f32 %v1117, %v1140
    %v1149 = vmul.f32 %v1120, %v1141
    %v1150 = vmul.f32 %v1123, %v1142
    %v1151 = vmul.f32 %v1126, %v1143
    %v1152 = vmul.f32 %v1129, %v1144
    %v1153 = vmul.f32 %v1132, %v1145
    %v1154 = vmul.f32 %v1135, %v1146
    %v1155 = vmul.f32 %v1138, %v1147
    %vm1156 = vcmask 7168
    %1157 = vst.msk [vmem:[%s9] sm:$0xff] %vm1156, %v1148
    %1158 = vst.msk [vmem:[%s9 + $0x8] sm:$0xff] %vm1156, %v1149
    %1159 = vst.msk [vmem:[%s9 + $0x10] sm:$0xff] %vm1156, %v1150
    %1160 = vst.msk [vmem:[%s9 + $0x18] sm:$0xff] %vm1156, %v1151
    %1161 = vst.msk [vmem:[%s9 + $0x20] sm:$0xff] %vm1156, %v1152
    %1162 = vst.msk [vmem:[%s9 + $0x28] sm:$0xff] %vm1156, %v1153
    %1163 = vst.msk [vmem:[%s9 + $0x30] sm:$0xff] %vm1156, %v1154
    %1164 = vst.msk [vmem:[%s9 + $0x38] sm:$0xff] %vm1156, %v1155
    %v1165 = vld [vmem:[%s3] sm:$0xff]
    %v1166 = vld [vmem:[%s3 + $0x8] sm:$0xff]
    %v1167 = vld [vmem:[%s3 + $0x10] sm:$0xff]
    %v1168 = vld [vmem:[%s3 + $0x18] sm:$0xff]
    %v1169 = vld [vmem:[%s3 + $0x20] sm:$0xff]
    %v1170 = vld [vmem:[%s3 + $0x28] sm:$0xff]
    %v1171 = vld [vmem:[%s3 + $0x30] sm:$0xff]
    %v1172 = vld [vmem:[%s3 + $0x38] sm:$0xff]
    %v1173 = vmul.f32 %v1148, %v1165
    %v1174 = vmul.f32 %v1149, %v1166
    %v1175 = vmul.f32 %v1150, %v1167
    %v1176 = vmul.f32 %v1151, %v1168
    %v1177 = vmul.f32 %v1152, %v1169
    %v1178 = vmul.f32 %v1153, %v1170
    %v1179 = vmul.f32 %v1154, %v1171
    %v1180 = vmul.f32 %v1155, %v1172
    %v1181 = vsel %vm1156, %v1173, 0.0
    %v1182 = vsel %vm1156, %v1174, 0.0
    %v1183 = vadd.f32 %v1181, %v1182
    %v1184 = vsel %vm1156, %v1175, 0.0
    %v1185 = vadd.f32 %v1183, %v1184
    %v1186 = vsel %vm1156, %v1176, 0.0
    %v1187 = vadd.f32 %v1185, %v1186
    %v1188 = vsel %vm1156, %v1177, 0.0
    %v1189 = vadd.f32 %v1187, %v1188
    %v1190 = vsel %vm1156, %v1178, 0.0
    %v1191 = vadd.f32 %v1189, %v1190
    %v1192 = vsel %vm1156, %v1179, 0.0
    %v1193 = vadd.f32 %v1191, %v1192
    %v1194 = vsel %vm1156, %v1180, 0.0
    %v1195 = vadd.f32 %v1193, %v1194
    %1196 = vst.msk [vmem:[%s10] sm:$0xff] %vm1156, %v1195
    // Predicated region
    $region42: #{tpu_custom_call.1} parent=1 // pred_check
      _
    $region43: #{tpu_custom_call.1} parent=1 // pred_check_branch
      %1198 = sbr.rel (0) target = $region45
    $region44: #{tpu_custom_call.1} parent=1 // pred_region
      _
    $region45: #{tpu_custom_call.1} parent=1 // pred_fallthru
      _
    // Predicated region
    $region46: #{tpu_custom_call.1} parent=1 // pred_check
      _
    $region47: #{tpu_custom_call.1} parent=1 // pred_check_branch
      %1200 = sbr.rel (0) target = $region49
    $region48: #{tpu_custom_call.1} parent=1 // pred_region
      _
    $region49: #{tpu_custom_call.1} parent=1 // pred_fallthru
      _
    // Predicated region
    $region50: #{tpu_custom_call.1} parent=1 // pred_check
      _
    $region51: #{tpu_custom_call.1} parent=1 // pred_check_branch
      %1202 = sbr.rel (0) target = $region53
    $region52: #{tpu_custom_call.1} parent=1 // pred_region
      _
    $region53: #{tpu_custom_call.1} parent=1 // pred_fallthru
      _
    // Predicated region
    $region54: #{tpu_custom_call.1} parent=1 // pred_check
      _
    $region55: #{tpu_custom_call.1} parent=1 // pred_check_branch
      %1204 = sbr.rel (0) target = $region57
    $region56: #{tpu_custom_call.1} parent=1 // pred_region
      _
    $region57: #{tpu_custom_call.1} parent=1 // pred_fallthru
      _
    %1205 = vsyncpa [#allocation6], 1

</llo_original>
